<compile_context>
chip_gen: v7x
topology: tpu7x:2x2x1
jax: 0.10.0
libtpu: 0.0.40
codegen_flags: <defaults>
</compile_context>

<pallas_src>
import functools
import math

import jax
import jax.numpy as jnp
from jax.experimental import pallas as pl
from jax.experimental.pallas import tpu as pltpu

LN_EPS = 1e-5          # PyTorch nn.LayerNorm default eps
MASK_FILL = -1e6       # d2l masked_softmax fill value (reference uses -1e6, not -inf)
APPROX_RECIP = True    # EUP approx reciprocal in softmax (~1e-3 rel err; inference OK)


def _round_up(x, m):
    return pl.cdiv(x, m) * m


def _concat(parts, axis):
    return parts[0] if len(parts) == 1 else jnp.concatenate(parts, axis=axis)


def _layernorm(z, gamma, beta):
    # f32 elementwise math (v5e has no bf16 VPU/EUP).
    mean = jnp.mean(z, axis=-1, keepdims=True)
    c = z - mean
    var = jnp.mean(c * c, axis=-1, keepdims=True)
    return c * jax.lax.rsqrt(var + LN_EPS) * gamma + beta


def _softmax_lastdim(scores):
    m = jnp.max(scores, axis=-1, keepdims=True)
    e = jnp.exp(scores - m)
    s = jnp.sum(e, axis=-1, keepdims=True)
    if APPROX_RECIP:
        return e * pl.reciprocal(s, approx=True)
    return e / s


# ------------------------- fused encoder-block kernel -------------------------

def _encoder_block_kernel(vl_ref,             # scalar-prefetch: (B,) int32 valid lens
                          x_ref,              # (Bb, S, D) f32 activations
                          wqkv_ref, bqkv_ref,  # (D,3D) bf16, (1,3D) f32
                          wo_ref, bo_ref,      # (D,D)  bf16, (1,D)  f32
                          ln1g_ref, ln1b_ref,
                          wf1_ref, bf1_ref,    # (D,F)  bf16, (1,F)  f32
                          wf2_ref, bf2_ref,    # (F,D)  bf16, (1,D)  f32
                          ln2g_ref, ln2b_ref,
                          o_ref,               # (Bb, S, D) f32
                          *, num_heads, head_dim, b_blk):
    b0 = pl.program_id(0)
    _, S, D = x_ref.shape
    x = x_ref[...].reshape(b_blk * S, D)                       # (Bb*S, D) f32

    # ---- fused QKV projection: one bf16 (D, 3D) matmul, f32 accumulate ----
    qkv = jnp.dot(x.astype(jnp.bfloat16), wqkv_ref[...],
                  preferred_element_type=jnp.float32) + bqkv_ref[...]
    q = qkv[:, :D]
    k = qkv[:, D:2 * D]
    v = qkv[:, 2 * D:]

    # ---- multi-head attention: one batched dot over all (row, head) tiles ----
    q_h, k_h, v_h = [], [], []
    for i in range(b_blk):
        r = slice(i * S, (i + 1) * S)
        for h in range(num_heads):
            c = slice(h * head_dim, (h + 1) * head_dim)
            q_h.append(q[r, c][None])
            k_h.append(k[r, c][None])
            v_h.append(v[r, c][None])
    qb = _concat(q_h, 0).astype(jnp.bfloat16)                  # (Bb*H, S, d)
    kb = _concat(k_h, 0).astype(jnp.bfloat16)
    vb = _concat(v_h, 0).astype(jnp.bfloat16)

    scale = 1.0 / math.sqrt(head_dim)
    scores = jax.lax.dot_general(
        qb, kb, dimension_numbers=(((2,), (2,)), ((0,), (0,))),
        preferred_element_type=jnp.float32) * scale            # (Bb*H, S, S) f32

    # d2l masked_softmax: key positions >= valid_len get filled with -1e6
    kpos = jax.lax.broadcasted_iota(jnp.int32, (num_heads, 1, S), 2)
    masked = []
    for i in range(b_blk):
        vl_i = vl_ref[b0 * b_blk + i]
        s_i = scores[i * num_heads:(i + 1) * num_heads]        # (H, S, S)
        masked.append(jnp.where(kpos < vl_i, s_i, MASK_FILL))
    scores = _concat(masked, 0)

    p = _softmax_lastdim(scores)                               # f32
    ctx = jax.lax.dot_general(
        p.astype(jnp.bfloat16), vb,
        dimension_numbers=(((2,), (1,)), ((0,), (0,))),
        preferred_element_type=jnp.float32)                    # (Bb*H, S, d) f32

    # merge heads back to (Bb*S, D), then ONE wide output projection (K = D)
    rows = []
    for i in range(b_blk):
        rows.append(_concat([ctx[i * num_heads + h] for h in range(num_heads)], -1))
    ctx2 = _concat(rows, 0)                                    # (Bb*S, D)

    attn = jnp.dot(ctx2.astype(jnp.bfloat16), wo_ref[...],
                   preferred_element_type=jnp.float32) + bo_ref[...]

    # ---- AddNorm 1 ---- (dropout identity, p = 0)
    y = _layernorm(x + attn, ln1g_ref[...], ln1b_ref[...])

    # ---- position-wise FFN (bf16 matmuls, f32 bias/ReLU) ----
    f = jnp.dot(y.astype(jnp.bfloat16), wf1_ref[...],
                preferred_element_type=jnp.float32) + bf1_ref[...]
    f = jnp.maximum(f, 0.0)
    f = jnp.dot(f.astype(jnp.bfloat16), wf2_ref[...],
                preferred_element_type=jnp.float32) + bf2_ref[...]

    # ---- AddNorm 2 ----
    o_ref[...] = _layernorm(y + f, ln2g_ref[...], ln2b_ref[...]).reshape(b_blk, S, D)


def encoder_block(X, valid_lens, blk, num_heads):
    """X: (B, S, D) f32; valid_lens: (B,) int32 -> (B, S, D) f32."""
    B, S, D = X.shape
    F = blk["w_ffn1"].shape[1]
    head_dim = D // num_heads

    # Block a couple of batch rows per grid step when it keeps >= 2 grid steps
    # (amortizes per-step overhead while the batch axis stays 'parallel').
    b_blk = 2 if (B > 2 and B % 2 == 0) else 1
    grid = (B // b_blk,)

    def fixed(shape):
        return pl.BlockSpec(shape, lambda b, vl: (0, 0))

    grid_spec = pltpu.PrefetchScalarGridSpec(
        num_scalar_prefetch=1,
        grid=grid,
        in_specs=[
            pl.BlockSpec((b_blk, S, D), lambda b, vl: (b, 0, 0)),   # X
            fixed((D, 3 * D)), fixed((1, 3 * D)),                   # wqkv, bqkv
            fixed((D, D)), fixed((1, D)),                           # wo, bo
            fixed((1, D)), fixed((1, D)),                           # ln1 gamma/beta
            fixed((D, F)), fixed((1, F)),                           # ffn1
            fixed((F, D)), fixed((1, D)),                           # ffn2
            fixed((1, D)), fixed((1, D)),                           # ln2 gamma/beta
        ],
        out_specs=pl.BlockSpec((b_blk, S, D), lambda b, vl: (b, 0, 0)),
    )
    return pl.pallas_call(
        functools.partial(_encoder_block_kernel, num_heads=num_heads,
                          head_dim=head_dim, b_blk=b_blk),
        out_shape=jax.ShapeDtypeStruct((B, S, D), jnp.float32),
        grid_spec=grid_spec,
        compiler_params=pltpu.CompilerParams(
            dimension_semantics=("parallel",),
            vmem_limit_bytes=64 * 1024 * 1024),
    )(valid_lens.astype(jnp.int32), X,
      blk["wqkv"], blk["bqkv"].reshape(1, 3 * D),
      blk["wo"], blk["bo"].reshape(1, D),
      blk["ln1_g"].reshape(1, D), blk["ln1_b"].reshape(1, D),
      blk["w_ffn1"], blk["b_ffn1"].reshape(1, F),
      blk["w_ffn2"], blk["b_ffn2"].reshape(1, D),
      blk["ln2_g"].reshape(1, D), blk["ln2_b"].reshape(1, D))


# ------------------------- MaskLM MLP (two stages) -------------------------

def _mlm_hidden_kernel(x_ref, w1_ref, b1_ref, g_ref, be_ref, h_ref):
    # Linear -> ReLU -> LayerNorm, computed exactly ONCE (not per vocab tile).
    h = jnp.dot(x_ref[...], w1_ref[...], preferred_element_type=jnp.float32)
    h = jnp.maximum(h + b1_ref[...], 0.0)
    h_ref[...] = _layernorm(h, g_ref[...], be_ref[...])


def _mlm_vocab_kernel(h_ref, w2_ref, b2_ref, o_ref):
    # One lane-dense vocab tile of the decode matmul.
    o_ref[...] = jnp.dot(h_ref[...], w2_ref[...],
                         preferred_element_type=jnp.float32) + b2_ref[...]


def mlm_mlp(x, w1, b1, gamma, beta, w2, b2):
    M, D = x.shape
    H = w1.shape[1]
    V = w2.shape[1]

    # Stage 1: hidden projection + ReLU + LayerNorm (single small kernel).
    h = pl.pallas_call(
        _mlm_hidden_kernel,
        out_shape=jax.ShapeDtypeStruct((M, H), jnp.float32),
        grid=(1,),
        in_specs=[pl.BlockSpec((M, D), lambda i: (0, 0)),
                  pl.BlockSpec((D, H), lambda i: (0, 0)),
                  pl.BlockSpec((1, H), lambda i: (0, 0)),
                  pl.BlockSpec((1, H), lambda i: (0, 0)),
                  pl.BlockSpec((1, H), lambda i: (0, 0))],
        out_specs=pl.BlockSpec((M, H), lambda i: (0, 0)),
    )(x.astype(jnp.bfloat16), w1,
      b1.reshape(1, H), gamma.reshape(1, H), beta.reshape(1, H))

    # Stage 2: vocab-tiled decode matmul.  Pad V to a multiple of the tile so
    # real BERT vocab sizes (e.g. 30522) never force the whole (H, V) weight
    # into VMEM.  tn up to 1024 lanes for dense stores / amortized grid steps.
    tn = min(1024, _round_up(V, 128))
    V_pad = _round_up(V, tn)
    w2p = w2 if V_pad == V else jnp.pad(w2, ((0, 0), (0, V_pad - V)))
    b2p = (b2 if V_pad == V else jnp.pad(b2, (0, V_pad - V))).reshape(1, V_pad)

    out = pl.pallas_call(
        _mlm_vocab_kernel,
        out_shape=jax.ShapeDtypeStruct((M, V_pad), jnp.float32),
        grid=(V_pad // tn,),
        in_specs=[pl.BlockSpec((M, H), lambda j: (0, 0)),
                  pl.BlockSpec((H, tn), lambda j: (0, j)),
                  pl.BlockSpec((1, tn), lambda j: (0, j))],
        out_specs=pl.BlockSpec((M, tn), lambda j: (0, j)),
        compiler_params=pltpu.CompilerParams(
            dimension_semantics=("parallel",),
            vmem_limit_bytes=64 * 1024 * 1024),
    )(h.astype(jnp.bfloat16), w2p, b2p)
    return out[:, :V]


# ------------------------- NSP head (plain XLA per review) -------------------------

def nsp_head(cls_tok, w_hid, b_hid, w_nsp, b_nsp):
    # Output lane width 2 + a (D,2) matmul is pure Pallas overhead; keep in XLA.
    h = jnp.tanh(cls_tok @ w_hid + b_hid)
    return h @ w_nsp + b_nsp


# ------------------------- parameter init (synthetic) -------------------------

def init_params(key, vocab_size, num_hiddens, ffn_num_hiddens, num_layers, max_len):
    keys = iter(jax.random.split(key, 128))

    def dense(k, fan_in, fan_out, dtype=jnp.float32):
        k1, k2 = jax.random.split(k)
        w = (jax.random.normal(k1, (fan_in, fan_out), jnp.float32) * 0.02).astype(dtype)
        b = jax.random.normal(k2, (fan_out,), jnp.float32) * 0.02
        return w, b

    bf16 = jnp.bfloat16
    p = {}
    p["tok_emb"] = jax.random.normal(next(keys), (vocab_size, num_hiddens), jnp.float32) * 0.02
    p["seg_emb"] = jax.random.normal(next(keys), (2, num_hiddens), jnp.float32) * 0.02
    p["pos_emb"] = jax.random.normal(next(keys), (1, max_len, num_hiddens), jnp.float32) * 0.02

    blocks = []
    for _ in range(num_layers):
        blk = {}
        # Matmul weights stored in bf16 (half the HBM traffic / VMEM footprint,
        # native MXU bf16 rate); biases + LayerNorm params stay f32.
        blk["wqkv"], blk["bqkv"] = dense(next(keys), num_hiddens, 3 * num_hiddens, bf16)
        blk["wo"], blk["bo"] = dense(next(keys), num_hiddens, num_hiddens, bf16)
        blk["ln1_g"] = jnp.ones((num_hiddens,), jnp.float32)
        blk["ln1_b"] = jnp.zeros((num_hiddens,), jnp.float32)
        blk["w_ffn1"], blk["b_ffn1"] = dense(next(keys), num_hiddens, ffn_num_hiddens, bf16)
        blk["w_ffn2"], blk["b_ffn2"] = dense(next(keys), ffn_num_hiddens, num_hiddens, bf16)
        blk["ln2_g"] = jnp.ones((num_hiddens,), jnp.float32)
        blk["ln2_b"] = jnp.zeros((num_hiddens,), jnp.float32)
        blocks.append(blk)
    p["blocks"] = blocks

    # BERTModel.hidden : Linear(hid_in_features, num_hiddens) + Tanh (plain XLA)
    p["w_hid"], p["b_hid"] = dense(next(keys), num_hiddens, num_hiddens)
    # MaskLM mlp
    p["w_mlm1"], p["b_mlm1"] = dense(next(keys), num_hiddens, num_hiddens, bf16)
    p["mlm_ln_g"] = jnp.ones((num_hiddens,), jnp.float32)
    p["mlm_ln_b"] = jnp.zeros((num_hiddens,), jnp.float32)
    p["w_mlm2"], p["b_mlm2"] = dense(next(keys), num_hiddens, vocab_size, bf16)
    # NextSentencePred
    p["w_nsp"], p["b_nsp"] = dense(next(keys), num_hiddens, 2)
    return p


# ------------------------- forward -------------------------

def bert_forward(params, tokens, segments, valid_lens, pred_positions, num_heads):
    B, S = tokens.shape

    # BERTEncoder embeddings (gathers are plain-JAX glue)
    X = params["tok_emb"][tokens] + params["seg_emb"][segments]
    X = (X + params["pos_emb"][:, :S, :]).astype(jnp.float32)

    # one fused Pallas kernel per encoder layer
    for blk in params["blocks"]:
        X = encoder_block(X, valid_lens, blk, num_heads)
    encoded_X = X                                            # (B, S, D)

    # MaskLM
    if pred_positions is not None:
        P = pred_positions.shape[1]
        batch_idx = jnp.repeat(jnp.arange(B), P)
        masked_X = encoded_X[batch_idx, pred_positions.reshape(-1)]   # (B*P, D)
        mlm_Y_hat = mlm_mlp(masked_X,
                            params["w_mlm1"], params["b_mlm1"],
                            params["mlm_ln_g"], params["mlm_ln_b"],
                            params["w_mlm2"], params["b_mlm2"]).reshape(B, P, -1)
    else:
        mlm_Y_hat = None

    # NSP on <cls> token: Linear+Tanh -> Linear(..., 2) in plain XLA
    cls_tok = encoded_X[:, 0, :]
    nsp_Y_hat = nsp_head(cls_tok, params["w_hid"], params["b_hid"],
                         params["w_nsp"], params["b_nsp"])
    return encoded_X, mlm_Y_hat, nsp_Y_hat


# ------------------------- main -------------------------

if __name__ == "__main__":
    vocab_size = 128
    num_hiddens = 32        # also hid/mlm/nsp in_features and key/query/value sizes
    ffn_num_hiddens = 64
    num_heads = 2
    num_layers = 2
    max_len = 64
    B, S = 2, 8

    key = jax.random.PRNGKey(0)
    pkey, tkey = jax.random.split(key)
    params = init_params(pkey, vocab_size, num_hiddens, ffn_num_hiddens,
                         num_layers, max_len)

    tokens = jax.random.randint(tkey, (B, S), 0, vocab_size, dtype=jnp.int32)
    segments = jnp.array([[0, 0, 0, 0, 1, 1, 1, 1],
                          [0, 0, 0, 1, 1, 1, 1, 1]], dtype=jnp.int32)
    valid_lens = jnp.array([8, 6], dtype=jnp.int32)          # per-example valid lens
    pred_positions = jnp.array([[1, 5, 2], [6, 1, 5]], dtype=jnp.int32)

    encoded_X, mlm_Y_hat, nsp_Y_hat = bert_forward(
        params, tokens, segments, valid_lens, pred_positions, num_heads)
    jax.block_until_ready((encoded_X, mlm_Y_hat, nsp_Y_hat))

    assert encoded_X.shape == (B, S, num_hiddens)
    assert mlm_Y_hat.shape == (B, 3, vocab_size)
    assert nsp_Y_hat.shape == (B, 2)
    assert bool(jnp.all(jnp.isfinite(encoded_X)))
    assert bool(jnp.all(jnp.isfinite(mlm_Y_hat)))
    assert bool(jnp.all(jnp.isfinite(nsp_Y_hat)))
    print("KERNEL_OK")
</pallas_src>

<mosaic_0001>
module attributes {stable_mosaic.version = 11 : i64} {
  func.func @_encoder_block_kernel(%arg0: i32, %arg1: memref<2xi32, #tpu.memory_space<smem>>, %arg2: memref<1x8x32xf32, #tpu.memory_space<vmem>>, %arg3: memref<32x96xbf16, #tpu.memory_space<vmem>>, %arg4: memref<1x96xf32, #tpu.memory_space<vmem>>, %arg5: memref<32x32xbf16, #tpu.memory_space<vmem>>, %arg6: memref<1x32xf32, #tpu.memory_space<vmem>>, %arg7: memref<1x32xf32, #tpu.memory_space<vmem>>, %arg8: memref<1x32xf32, #tpu.memory_space<vmem>>, %arg9: memref<32x64xbf16, #tpu.memory_space<vmem>>, %arg10: memref<1x64xf32, #tpu.memory_space<vmem>>, %arg11: memref<64x32xbf16, #tpu.memory_space<vmem>>, %arg12: memref<1x32xf32, #tpu.memory_space<vmem>>, %arg13: memref<1x32xf32, #tpu.memory_space<vmem>>, %arg14: memref<1x32xf32, #tpu.memory_space<vmem>>, %arg15: memref<1x8x32xf32, #tpu.memory_space<vmem>>) attributes {dimension_semantics = [#tpu.dimension_semantics<parallel>], iteration_bounds = array<i64: 2>, scalar_prefetch = 1 : i64, scratch_operands = 0 : i64, tpu.core_type = #tpu.core_type<tc>, window_params = [{transform_indices = @transform_0, window_bounds = array<i64: 1, 8, 32>}, {pipeline_mode = #tpu.pipeline_mode<synchronous>, transform_indices = @transform_1, window_bounds = array<i64: 32, 96>}, {pipeline_mode = #tpu.pipeline_mode<synchronous>, transform_indices = @transform_2, window_bounds = array<i64: 1, 96>}, {pipeline_mode = #tpu.pipeline_mode<synchronous>, transform_indices = @transform_3, window_bounds = array<i64: 32, 32>}, {pipeline_mode = #tpu.pipeline_mode<synchronous>, transform_indices = @transform_4, window_bounds = array<i64: 1, 32>}, {pipeline_mode = #tpu.pipeline_mode<synchronous>, transform_indices = @transform_5, window_bounds = array<i64: 1, 32>}, {pipeline_mode = #tpu.pipeline_mode<synchronous>, transform_indices = @transform_6, window_bounds = array<i64: 1, 32>}, {pipeline_mode = #tpu.pipeline_mode<synchronous>, transform_indices = @transform_7, window_bounds = array<i64: 32, 64>}, {pipeline_mode = #tpu.pipeline_mode<synchronous>, transform_indices = @transform_8, window_bounds = array<i64: 1, 64>}, {pipeline_mode = #tpu.pipeline_mode<synchronous>, transform_indices = @transform_9, window_bounds = array<i64: 64, 32>}, {pipeline_mode = #tpu.pipeline_mode<synchronous>, transform_indices = @transform_10, window_bounds = array<i64: 1, 32>}, {pipeline_mode = #tpu.pipeline_mode<synchronous>, transform_indices = @transform_11, window_bounds = array<i64: 1, 32>}, {pipeline_mode = #tpu.pipeline_mode<synchronous>, transform_indices = @transform_12, window_bounds = array<i64: 1, 32>}, {transform_indices = @transform_13, window_bounds = array<i64: 1, 8, 32>}]} {
    %c0 = arith.constant 0 : index
    %c0_0 = arith.constant 0 : index
    %c0_1 = arith.constant 0 : index
    %0 = vector.load %arg2[%c0, %c0_0, %c0_1] : memref<1x8x32xf32, #tpu.memory_space<vmem>>, vector<1x8x32xf32>
    %1 = vector.shape_cast %0 : vector<1x8x32xf32> to vector<8x32xf32>
    %2 = arith.truncf %1 : vector<8x32xf32> to vector<8x32xbf16>
    %c0_2 = arith.constant 0 : index
    %c0_3 = arith.constant 0 : index
    %3 = vector.load %arg3[%c0_2, %c0_3] : memref<32x96xbf16, #tpu.memory_space<vmem>>, vector<32x96xbf16>
    %cst = arith.constant dense<0.000000e+00> : vector<8x96xf32>
    %4 = tpu.matmul %2, %3, %cst {dimension_numbers = #tpu.dot_dimension_numbers<[1], [0], [0], [1], [0, 0, 1, 1], [], []>} : vector<8x32xbf16>, vector<32x96xbf16>, vector<8x96xf32> -> vector<8x96xf32>
    %c0_4 = arith.constant 0 : index
    %c0_5 = arith.constant 0 : index
    %5 = vector.load %arg4[%c0_4, %c0_5] : memref<1x96xf32, #tpu.memory_space<vmem>>, vector<1x96xf32>
    %6 = vector.broadcast %5 : vector<1x96xf32> to vector<8x96xf32>
    %7 = arith.addf %4, %6 : vector<8x96xf32>
    %8 = vector.extract_strided_slice %7 {offsets = [0, 0], sizes = [8, 32], strides = [1, 1]} : vector<8x96xf32> to vector<8x32xf32>
    %9 = vector.extract_strided_slice %7 {offsets = [0, 32], sizes = [8, 32], strides = [1, 1]} : vector<8x96xf32> to vector<8x32xf32>
    %10 = vector.extract_strided_slice %7 {offsets = [0, 64], sizes = [8, 32], strides = [1, 1]} : vector<8x96xf32> to vector<8x32xf32>
    %11 = vector.extract_strided_slice %8 {offsets = [0, 0], sizes = [8, 16], strides = [1, 1]} : vector<8x32xf32> to vector<8x16xf32>
    %12 = vector.shape_cast %11 : vector<8x16xf32> to vector<1x8x16xf32>
    %13 = vector.extract_strided_slice %9 {offsets = [0, 0], sizes = [8, 16], strides = [1, 1]} : vector<8x32xf32> to vector<8x16xf32>
    %14 = vector.shape_cast %13 : vector<8x16xf32> to vector<1x8x16xf32>
    %15 = vector.extract_strided_slice %10 {offsets = [0, 0], sizes = [8, 16], strides = [1, 1]} : vector<8x32xf32> to vector<8x16xf32>
    %16 = vector.shape_cast %15 : vector<8x16xf32> to vector<1x8x16xf32>
    %17 = vector.extract_strided_slice %8 {offsets = [0, 16], sizes = [8, 16], strides = [1, 1]} : vector<8x32xf32> to vector<8x16xf32>
    %18 = vector.shape_cast %17 : vector<8x16xf32> to vector<1x8x16xf32>
    %19 = vector.extract_strided_slice %9 {offsets = [0, 16], sizes = [8, 16], strides = [1, 1]} : vector<8x32xf32> to vector<8x16xf32>
    %20 = vector.shape_cast %19 : vector<8x16xf32> to vector<1x8x16xf32>
    %21 = vector.extract_strided_slice %10 {offsets = [0, 16], sizes = [8, 16], strides = [1, 1]} : vector<8x32xf32> to vector<8x16xf32>
    %22 = vector.shape_cast %21 : vector<8x16xf32> to vector<1x8x16xf32>
    %23 = tpu.concatenate %12, %18 in 0 : vector<1x8x16xf32>, vector<1x8x16xf32> -> vector<2x8x16xf32>
    %24 = arith.truncf %23 : vector<2x8x16xf32> to vector<2x8x16xbf16>
    %25 = tpu.concatenate %14, %20 in 0 : vector<1x8x16xf32>, vector<1x8x16xf32> -> vector<2x8x16xf32>
    %26 = arith.truncf %25 : vector<2x8x16xf32> to vector<2x8x16xbf16>
    %27 = tpu.concatenate %16, %22 in 0 : vector<1x8x16xf32>, vector<1x8x16xf32> -> vector<2x8x16xf32>
    %28 = arith.truncf %27 : vector<2x8x16xf32> to vector<2x8x16xbf16>
    %cst_6 = arith.constant dense<0.000000e+00> : vector<2x8x8xf32>
    %29 = tpu.matmul %24, %26, %cst_6 {dimension_numbers = #tpu.dot_dimension_numbers<[2], [2], [1], [1], [0, 0, 0, 1, 1, 1], [0], [0]>} : vector<2x8x16xbf16>, vector<2x8x16xbf16>, vector<2x8x8xf32> -> vector<2x8x8xf32>
    %cst_7 = arith.constant 2.500000e-01 : f32
    %30 = vector.broadcast %cst_7 : f32 to vector<2x8x8xf32>
    %31 = arith.mulf %29, %30 : vector<2x8x8xf32>
    %32 = tpu.iota {dimensions = array<i32: 2>} : vector<2x1x8xi32>
    %c1_i32 = arith.constant 1 : i32
    %33 = arith.muli %arg0, %c1_i32 : i32
    %c0_i32 = arith.constant 0 : i32
    %34 = arith.addi %33, %c0_i32 : i32
    %35 = arith.index_cast %34 : i32 to index
    %36 = memref.load %arg1[%35] : memref<2xi32, #tpu.memory_space<smem>>
    %37 = vector.broadcast %36 : i32 to vector<2x1x8xi32>
    %38 = arith.cmpi slt, %32, %37 : vector<2x1x8xi32>
    %cst_8 = arith.constant -1.000000e+06 : f32
    %39 = vector.shape_cast %38 : vector<2x1x8xi1> to vector<2x1x8xi1>
    %40 = vector.broadcast %39 : vector<2x1x8xi1> to vector<2x8x8xi1>
    %41 = vector.broadcast %cst_8 : f32 to vector<2x8x8xf32>
    %42 = arith.select %40, %31, %41 : vector<2x8x8xi1>, vector<2x8x8xf32>
    %cst_9 = arith.constant dense<0xFF800000> : vector<2x8xf32>
    %43 = vector.multi_reduction <maximumf>, %42, %cst_9 [2] : vector<2x8x8xf32> to vector<2x8xf32>
    %44 = vector.shape_cast %43 : vector<2x8xf32> to vector<2x8x1xf32>
    %45 = vector.broadcast %44 : vector<2x8x1xf32> to vector<2x8x8xf32>
    %46 = arith.subf %42, %45 : vector<2x8x8xf32>
    %47 = math.exp %46 : vector<2x8x8xf32>
    %cst_10 = arith.constant dense<0.000000e+00> : vector<2x8xf32>
    %48 = vector.multi_reduction <add>, %47, %cst_10 [2] : vector<2x8x8xf32> to vector<2x8xf32>
    %49 = vector.shape_cast %48 : vector<2x8xf32> to vector<2x8x1xf32>
    %50 = tpu.reciprocal %49 {approx = true} : vector<2x8x1xf32> -> vector<2x8x1xf32>
    %51 = vector.broadcast %50 : vector<2x8x1xf32> to vector<2x8x8xf32>
    %52 = arith.mulf %47, %51 : vector<2x8x8xf32>
    %53 = arith.truncf %52 : vector<2x8x8xf32> to vector<2x8x8xbf16>
    %cst_11 = arith.constant dense<0.000000e+00> : vector<2x8x16xf32>
    %54 = tpu.matmul %53, %28, %cst_11 {dimension_numbers = #tpu.dot_dimension_numbers<[2], [1], [1], [2], [0, 0, 0, 1, 1, 2], [0], [0]>} : vector<2x8x8xbf16>, vector<2x8x16xbf16>, vector<2x8x16xf32> -> vector<2x8x16xf32>
    %55 = vector.extract_strided_slice %54 {offsets = [0, 0, 0], sizes = [1, 8, 16], strides = [1, 1, 1]} : vector<2x8x16xf32> to vector<1x8x16xf32>
    %56 = vector.shape_cast %55 : vector<1x8x16xf32> to vector<8x16xf32>
    %57 = vector.extract_strided_slice %54 {offsets = [1, 0, 0], sizes = [1, 8, 16], strides = [1, 1, 1]} : vector<2x8x16xf32> to vector<1x8x16xf32>
    %58 = vector.shape_cast %57 : vector<1x8x16xf32> to vector<8x16xf32>
    %59 = tpu.concatenate %56, %58 in 1 : vector<8x16xf32>, vector<8x16xf32> -> vector<8x32xf32>
    %60 = arith.truncf %59 : vector<8x32xf32> to vector<8x32xbf16>
    %c0_12 = arith.constant 0 : index
    %c0_13 = arith.constant 0 : index
    %61 = vector.load %arg5[%c0_12, %c0_13] : memref<32x32xbf16, #tpu.memory_space<vmem>>, vector<32x32xbf16>
    %cst_14 = arith.constant dense<0.000000e+00> : vector<8x32xf32>
    %62 = tpu.matmul %60, %61, %cst_14 {dimension_numbers = #tpu.dot_dimension_numbers<[1], [0], [0], [1], [0, 0, 1, 1], [], []>} : vector<8x32xbf16>, vector<32x32xbf16>, vector<8x32xf32> -> vector<8x32xf32>
    %c0_15 = arith.constant 0 : index
    %c0_16 = arith.constant 0 : index
    %63 = vector.load %arg6[%c0_15, %c0_16] : memref<1x32xf32, #tpu.memory_space<vmem>>, vector<1x32xf32>
    %64 = vector.broadcast %63 : vector<1x32xf32> to vector<8x32xf32>
    %65 = arith.addf %62, %64 : vector<8x32xf32>
    %66 = arith.addf %1, %65 : vector<8x32xf32>
    %c0_17 = arith.constant 0 : index
    %c0_18 = arith.constant 0 : index
    %67 = vector.load %arg7[%c0_17, %c0_18] : memref<1x32xf32, #tpu.memory_space<vmem>>, vector<1x32xf32>
    %c0_19 = arith.constant 0 : index
    %c0_20 = arith.constant 0 : index
    %68 = vector.load %arg8[%c0_19, %c0_20] : memref<1x32xf32, #tpu.memory_space<vmem>>, vector<1x32xf32>
    %cst_21 = arith.constant dense<0.000000e+00> : vector<8xf32>
    %69 = vector.multi_reduction <add>, %66, %cst_21 [1] : vector<8x32xf32> to vector<8xf32>
    %70 = vector.shape_cast %69 : vector<8xf32> to vector<8x1xf32>
    %cst_22 = arith.constant 3.200000e+01 : f32
    %71 = vector.broadcast %cst_22 : f32 to vector<8x1xf32>
    %72 = arith.divf %70, %71 : vector<8x1xf32>
    %73 = vector.broadcast %72 : vector<8x1xf32> to vector<8x32xf32>
    %74 = arith.subf %66, %73 : vector<8x32xf32>
    %75 = arith.mulf %74, %74 : vector<8x32xf32>
    %cst_23 = arith.constant dense<0.000000e+00> : vector<8xf32>
    %76 = vector.multi_reduction <add>, %75, %cst_23 [1] : vector<8x32xf32> to vector<8xf32>
    %77 = vector.shape_cast %76 : vector<8xf32> to vector<8x1xf32>
    %cst_24 = arith.constant 3.200000e+01 : f32
    %78 = vector.broadcast %cst_24 : f32 to vector<8x1xf32>
    %79 = arith.divf %77, %78 : vector<8x1xf32>
    %cst_25 = arith.constant 9.99999974E-6 : f32
    %80 = vector.broadcast %cst_25 : f32 to vector<8x1xf32>
    %81 = arith.addf %79, %80 : vector<8x1xf32>
    %82 = math.rsqrt %81 : vector<8x1xf32>
    %83 = vector.broadcast %82 : vector<8x1xf32> to vector<8x32xf32>
    %84 = arith.mulf %74, %83 : vector<8x32xf32>
    %85 = vector.broadcast %67 : vector<1x32xf32> to vector<8x32xf32>
    %86 = arith.mulf %84, %85 : vector<8x32xf32>
    %87 = vector.broadcast %68 : vector<1x32xf32> to vector<8x32xf32>
    %88 = arith.addf %86, %87 : vector<8x32xf32>
    %89 = arith.truncf %88 : vector<8x32xf32> to vector<8x32xbf16>
    %c0_26 = arith.constant 0 : index
    %c0_27 = arith.constant 0 : index
    %90 = vector.load %arg9[%c0_26, %c0_27] : memref<32x64xbf16, #tpu.memory_space<vmem>>, vector<32x64xbf16>
    %cst_28 = arith.constant dense<0.000000e+00> : vector<8x64xf32>
    %91 = tpu.matmul %89, %90, %cst_28 {dimension_numbers = #tpu.dot_dimension_numbers<[1], [0], [0], [1], [0, 0, 1, 1], [], []>} : vector<8x32xbf16>, vector<32x64xbf16>, vector<8x64xf32> -> vector<8x64xf32>
    %c0_29 = arith.constant 0 : index
    %c0_30 = arith.constant 0 : index
    %92 = vector.load %arg10[%c0_29, %c0_30] : memref<1x64xf32, #tpu.memory_space<vmem>>, vector<1x64xf32>
    %93 = vector.broadcast %92 : vector<1x64xf32> to vector<8x64xf32>
    %94 = arith.addf %91, %93 : vector<8x64xf32>
    %cst_31 = arith.constant 0.000000e+00 : f32
    %95 = vector.broadcast %cst_31 : f32 to vector<8x64xf32>
    %96 = arith.maximumf %94, %95 : vector<8x64xf32>
    %97 = arith.truncf %96 : vector<8x64xf32> to vector<8x64xbf16>
    %c0_32 = arith.constant 0 : index
    %c0_33 = arith.constant 0 : index
    %98 = vector.load %arg11[%c0_32, %c0_33] : memref<64x32xbf16, #tpu.memory_space<vmem>>, vector<64x32xbf16>
    %cst_34 = arith.constant dense<0.000000e+00> : vector<8x32xf32>
    %99 = tpu.matmul %97, %98, %cst_34 {dimension_numbers = #tpu.dot_dimension_numbers<[1], [0], [0], [1], [0, 0, 1, 1], [], []>} : vector<8x64xbf16>, vector<64x32xbf16>, vector<8x32xf32> -> vector<8x32xf32>
    %c0_35 = arith.constant 0 : index
    %c0_36 = arith.constant 0 : index
    %100 = vector.load %arg12[%c0_35, %c0_36] : memref<1x32xf32, #tpu.memory_space<vmem>>, vector<1x32xf32>
    %101 = vector.broadcast %100 : vector<1x32xf32> to vector<8x32xf32>
    %102 = arith.addf %99, %101 : vector<8x32xf32>
    %103 = arith.addf %88, %102 : vector<8x32xf32>
    %c0_37 = arith.constant 0 : index
    %c0_38 = arith.constant 0 : index
    %104 = vector.load %arg13[%c0_37, %c0_38] : memref<1x32xf32, #tpu.memory_space<vmem>>, vector<1x32xf32>
    %c0_39 = arith.constant 0 : index
    %c0_40 = arith.constant 0 : index
    %105 = vector.load %arg14[%c0_39, %c0_40] : memref<1x32xf32, #tpu.memory_space<vmem>>, vector<1x32xf32>
    %cst_41 = arith.constant dense<0.000000e+00> : vector<8xf32>
    %106 = vector.multi_reduction <add>, %103, %cst_41 [1] : vector<8x32xf32> to vector<8xf32>
    %107 = vector.shape_cast %106 : vector<8xf32> to vector<8x1xf32>
    %cst_42 = arith.constant 3.200000e+01 : f32
    %108 = vector.broadcast %cst_42 : f32 to vector<8x1xf32>
    %109 = arith.divf %107, %108 : vector<8x1xf32>
    %110 = vector.broadcast %109 : vector<8x1xf32> to vector<8x32xf32>
    %111 = arith.subf %103, %110 : vector<8x32xf32>
    %112 = arith.mulf %111, %111 : vector<8x32xf32>
    %cst_43 = arith.constant dense<0.000000e+00> : vector<8xf32>
    %113 = vector.multi_reduction <add>, %112, %cst_43 [1] : vector<8x32xf32> to vector<8xf32>
    %114 = vector.shape_cast %113 : vector<8xf32> to vector<8x1xf32>
    %cst_44 = arith.constant 3.200000e+01 : f32
    %115 = vector.broadcast %cst_44 : f32 to vector<8x1xf32>
    %116 = arith.divf %114, %115 : vector<8x1xf32>
    %cst_45 = arith.constant 9.99999974E-6 : f32
    %117 = vector.broadcast %cst_45 : f32 to vector<8x1xf32>
    %118 = arith.addf %116, %117 : vector<8x1xf32>
    %119 = math.rsqrt %118 : vector<8x1xf32>
    %120 = vector.broadcast %119 : vector<8x1xf32> to vector<8x32xf32>
    %121 = arith.mulf %111, %120 : vector<8x32xf32>
    %122 = vector.broadcast %104 : vector<1x32xf32> to vector<8x32xf32>
    %123 = arith.mulf %121, %122 : vector<8x32xf32>
    %124 = vector.broadcast %105 : vector<1x32xf32> to vector<8x32xf32>
    %125 = arith.addf %123, %124 : vector<8x32xf32>
    %126 = vector.shape_cast %125 : vector<8x32xf32> to vector<1x8x32xf32>
    %c0_46 = arith.constant 0 : index
    %c0_47 = arith.constant 0 : index
    %c0_48 = arith.constant 0 : index
    %127 = vector.load %arg15[%c0_46, %c0_47, %c0_48] : memref<1x8x32xf32, #tpu.memory_space<vmem>>, vector<1x8x32xf32>
    tpu.vector_store %arg15[%c0_46, %c0_47, %c0_48], %126 {strides = array<i32>} : memref<1x8x32xf32, #tpu.memory_space<vmem>>, vector<1x8x32xf32>,
    return
  }
  func.func @transform_0(%arg0: i32, %arg1: memref<2xi32, #tpu.memory_space<smem>>) -> (i32, i32, i32) {
    %c0_i32 = arith.constant 0 : i32
    %c0_i32_0 = arith.constant 0 : i32
    %c0_i32_1 = arith.constant 0 : i32
    return %arg0, %c0_i32, %c0_i32_0 : i32, i32, i32
  }
  func.func @transform_1(%arg0: i32, %arg1: memref<2xi32, #tpu.memory_space<smem>>) -> (i32, i32) {
    %c0_i32 = arith.constant 0 : i32
    %c0_i32_0 = arith.constant 0 : i32
    %c0_i32_1 = arith.constant 0 : i32
    return %c0_i32, %c0_i32_0 : i32, i32
  }
  func.func @transform_2(%arg0: i32, %arg1: memref<2xi32, #tpu.memory_space<smem>>) -> (i32, i32) {
    %c0_i32 = arith.constant 0 : i32
    %c0_i32_0 = arith.constant 0 : i32
    %c0_i32_1 = arith.constant 0 : i32
    return %c0_i32, %c0_i32_0 : i32, i32
  }
  func.func @transform_3(%arg0: i32, %arg1: memref<2xi32, #tpu.memory_space<smem>>) -> (i32, i32) {
    %c0_i32 = arith.constant 0 : i32
    %c0_i32_0 = arith.constant 0 : i32
    %c0_i32_1 = arith.constant 0 : i32
    return %c0_i32, %c0_i32_0 : i32, i32
  }
  func.func @transform_4(%arg0: i32, %arg1: memref<2xi32, #tpu.memory_space<smem>>) -> (i32, i32) {
    %c0_i32 = arith.constant 0 : i32
    %c0_i32_0 = arith.constant 0 : i32
    %c0_i32_1 = arith.constant 0 : i32
    return %c0_i32, %c0_i32_0 : i32, i32
  }
  func.func @transform_5(%arg0: i32, %arg1: memref<2xi32, #tpu.memory_space<smem>>) -> (i32, i32) {
    %c0_i32 = arith.constant 0 : i32
    %c0_i32_0 = arith.constant 0 : i32
    %c0_i32_1 = arith.constant 0 : i32
    return %c0_i32, %c0_i32_0 : i32, i32
  }
  func.func @transform_6(%arg0: i32, %arg1: memref<2xi32, #tpu.memory_space<smem>>) -> (i32, i32) {
    %c0_i32 = arith.constant 0 : i32
    %c0_i32_0 = arith.constant 0 : i32
    %c0_i32_1 = arith.constant 0 : i32
    return %c0_i32, %c0_i32_0 : i32, i32
  }
  func.func @transform_7(%arg0: i32, %arg1: memref<2xi32, #tpu.memory_space<smem>>) -> (i32, i32) {
    %c0_i32 = arith.constant 0 : i32
    %c0_i32_0 = arith.constant 0 : i32
    %c0_i32_1 = arith.constant 0 : i32
    return %c0_i32, %c0_i32_0 : i32, i32
  }
  func.func @transform_8(%arg0: i32, %arg1: memref<2xi32, #tpu.memory_space<smem>>) -> (i32, i32) {
    %c0_i32 = arith.constant 0 : i32
    %c0_i32_0 = arith.constant 0 : i32
    %c0_i32_1 = arith.constant 0 : i32
    return %c0_i32, %c0_i32_0 : i32, i32
  }
  func.func @transform_9(%arg0: i32, %arg1: memref<2xi32, #tpu.memory_space<smem>>) -> (i32, i32) {
    %c0_i32 = arith.constant 0 : i32
    %c0_i32_0 = arith.constant 0 : i32
    %c0_i32_1 = arith.constant 0 : i32
    return %c0_i32, %c0_i32_0 : i32, i32
  }
  func.func @transform_10(%arg0: i32, %arg1: memref<2xi32, #tpu.memory_space<smem>>) -> (i32, i32) {
    %c0_i32 = arith.constant 0 : i32
    %c0_i32_0 = arith.constant 0 : i32
    %c0_i32_1 = arith.constant 0 : i32
    return %c0_i32, %c0_i32_0 : i32, i32
  }
  func.func @transform_11(%arg0: i32, %arg1: memref<2xi32, #tpu.memory_space<smem>>) -> (i32, i32) {
    %c0_i32 = arith.constant 0 : i32
    %c0_i32_0 = arith.constant 0 : i32
    %c0_i32_1 = arith.constant 0 : i32
    return %c0_i32, %c0_i32_0 : i32, i32
  }
  func.func @transform_12(%arg0: i32, %arg1: memref<2xi32, #tpu.memory_space<smem>>) -> (i32, i32) {
    %c0_i32 = arith.constant 0 : i32
    %c0_i32_0 = arith.constant 0 : i32
    %c0_i32_1 = arith.constant 0 : i32
    return %c0_i32, %c0_i32_0 : i32, i32
  }
  func.func @transform_13(%arg0: i32, %arg1: memref<2xi32, #tpu.memory_space<smem>>) -> (i32, i32, i32) {
    %c0_i32 = arith.constant 0 : i32
    %c0_i32_0 = arith.constant 0 : i32
    %c0_i32_1 = arith.constant 0 : i32
    return %arg0, %c0_i32, %c0_i32_0 : i32, i32, i32
  }
}

</mosaic_0001>

<llo_original>
// kernel: tpu_custom_call.1
$region0: #{tpu_custom_call.1}
  #allocation0 [shape = 'u32[]', space=smem, size = 0x4, offset = 0x4, fixed_abs, tag = 'smem constant byte address 0x4 - core index']
  #allocation1 [shape = 'u32[144,128]{1,0:T(1,128)}', space=vmem, size = 0x12000, scoped, tag = 'internal scratch']
  #allocation2 [shape = 's32[1]{0}', space=sflag, size = 0x4, scoped, tag = 'scoped memory for tpu_custom_call.1']
  #allocation3 [shape = 'u8[512]{0}', space=smem, size = 0x200, scoped, tag = 'prefetched SMEM operand 0']
  %s0 = inlined_call_operand.hbm [shape: s32[2], index: 0, kind: input, shape index: {}]
  %s1 = inlined_call_operand.hbm [shape: f32[2,8,32], index: 1, kind: input, shape index: {}]
  %s2 = inlined_call_operand.hbm [shape: bf16[32,96], index: 2, kind: input, shape index: {}]
  %s3 = inlined_call_operand.hbm [shape: f32[1,96], index: 3, kind: input, shape index: {}]
  %s4 = inlined_call_operand.hbm [shape: bf16[32,32], index: 4, kind: input, shape index: {}]
  %s5 = inlined_call_operand.hbm [shape: f32[1,32], index: 5, kind: input, shape index: {}]
  %s6 = inlined_call_operand.hbm [shape: f32[1,32], index: 6, kind: input, shape index: {}]
  %s7 = inlined_call_operand.hbm [shape: f32[1,32], index: 7, kind: input, shape index: {}]
  %s8 = inlined_call_operand.hbm [shape: bf16[32,64], index: 8, kind: input, shape index: {}]
  %s9 = inlined_call_operand.hbm [shape: f32[1,64], index: 9, kind: input, shape index: {}]
  %s10 = inlined_call_operand.hbm [shape: bf16[64,32], index: 10, kind: input, shape index: {}]
  %s11 = inlined_call_operand.hbm [shape: f32[1,32], index: 11, kind: input, shape index: {}]
  %s12 = inlined_call_operand.hbm [shape: f32[1,32], index: 12, kind: input, shape index: {}]
  %s13 = inlined_call_operand.hbm [shape: f32[1,32], index: 13, kind: input, shape index: {}]
  %s14 = inlined_call_operand.hbm [shape: f32[2,8,32], index: 14, kind: output, shape index: {}]
  %s15 = sld [smem:[#allocation0]]
  $region137: #{tpu_custom_call.1} parent=0
    _
  %s17 = ssub.s32 1, %s15
  %s18 = scalar_select 0, %s17, %s15
  %20 = dma.hbm_to_smem %s0, 16, [#allocation3], [#allocation2]
  %21 = dma.done [#allocation2], 16
  %22 = sfence
  $region1: #{tpu_custom_call.1} parent=0
    #allocation4 [shape = 'u8[8192]{0}', space=vmem, size = 0x2000, scoped, tag = 'input window, operand 1']
    #allocation5 [shape = 's32[2]{0}', space=sflag, size = 0x8, scoped, tag = 'scoped memory for tpu_custom_call.1']
    #allocation6 [shape = 's32[2]{0}', space=sflag, size = 0x8, scoped, tag = 'scoped memory for tpu_custom_call.1']
    #allocation7 [shape = 'u8[8192]{0}', space=vmem, size = 0x2000, scoped, tag = 'input window, operand 2, single buffered']
    #allocation8 [shape = 's32[1]{0}', space=sflag, size = 0x4, scoped, tag = 'scoped memory for tpu_custom_call.1']
    #allocation9 [shape = 'u8[512]{0}', space=vmem, size = 0x400, scoped, tag = 'input window, operand 3, single buffered']
    #allocation10 [shape = 'u8[8192]{0}', space=vmem, size = 0x2000, scoped, tag = 'input window, operand 4, single buffered']
    #allocation11 [shape = 's32[1]{0}', space=sflag, size = 0x4, scoped, tag = 'scoped memory for tpu_custom_call.1']
    #allocation12 [shape = 'u8[512]{0}', space=vmem, size = 0x400, scoped, tag = 'input window, operand 5, single buffered']
    #allocation13 [shape = 'u8[512]{0}', space=vmem, size = 0x400, scoped, tag = 'input window, operand 6, single buffered']
    #allocation14 [shape = 's32[1]{0}', space=sflag, size = 0x4, scoped, tag = 'scoped memory for tpu_custom_call.1']
    #allocation15 [shape = 'u8[512]{0}', space=vmem, size = 0x400, scoped, tag = 'input window, operand 7, single buffered']
    #allocation16 [shape = 'u8[8192]{0}', space=vmem, size = 0x2000, scoped, tag = 'input window, operand 8, single buffered']
    #allocation17 [shape = 's32[1]{0}', space=sflag, size = 0x4, scoped, tag = 'scoped memory for tpu_custom_call.1']
    #allocation18 [shape = 'u8[512]{0}', space=vmem, size = 0x400, scoped, tag = 'input window, operand 9, single buffered']
    #allocation19 [shape = 'u8[16384]{0}', space=vmem, size = 0x4000, scoped, tag = 'input window, operand 10, single buffered']
    #allocation20 [shape = 's32[1]{0}', space=sflag, size = 0x4, scoped, tag = 'scoped memory for tpu_custom_call.1']
    #allocation21 [shape = 'u8[512]{0}', space=vmem, size = 0x400, scoped, tag = 'input window, operand 11, single buffered']
    #allocation22 [shape = 'u8[512]{0}', space=vmem, size = 0x400, scoped, tag = 'input window, operand 12, single buffered']
    #allocation23 [shape = 's32[1]{0}', space=sflag, size = 0x4, scoped, tag = 'scoped memory for tpu_custom_call.1']
    #allocation24 [shape = 'u8[512]{0}', space=vmem, size = 0x400, scoped, tag = 'input window, operand 13, single buffered']
    #allocation25 [shape = 'u8[8192]{0}', space=vmem, size = 0x2000, scoped, tag = 'output window, operand 0']
    %23 = vsyncpa [#allocation5], 0
    %s24 = scalar_lea.sflag [#allocation5], 1
    %25 = vsyncpa %s24, 0
    %26 = vsyncpa [#allocation8], 0
    %27 = vsyncpa [#allocation11], 0
    %28 = vsyncpa [#allocation14], 0
    %29 = vsyncpa [#allocation17], 0
    %30 = vsyncpa [#allocation20], 0
    %31 = vsyncpa [#allocation23], 0
    %32 = vsyncpa [#allocation6], 0
    %s33 = scalar_lea.sflag [#allocation6], 1
    %34 = vsyncpa %s33, 0
    loop: start=0, step=1, limit=4
    $region2: #{tpu_custom_call.1} parent=1 // loop_pre_header
      _
    $region3: #{tpu_custom_call.1} parent=1 // loop_header
      %s36 = sphi 0, %s40
      %p37 = scmp.ge.s32.totalorder %s36, 4
      %s46 = sphi 0, %s48
      %s49 = sphi 0, %s46
      %s50 = sphi 0, %s49
      %s66 = sphi 0, %s50
      %s70 = sphi 0, %s70
      %s72 = sphi 0, %s70
      %s73 = sphi 0, %s72
      %s87 = sphi 0, %s73
      %s91 = sphi 0, %s91
      %s93 = sphi 0, %s91
      %s94 = sphi 0, %s93
      %s108 = sphi 0, %s94
      %s112 = sphi 0, %s112
      %s114 = sphi 0, %s112
      %s115 = sphi 0, %s114
      %s129 = sphi 0, %s115
      %s133 = sphi 0, %s133
      %s135 = sphi 0, %s133
      %s136 = sphi 0, %s135
      %s150 = sphi 0, %s136
      %s154 = sphi 0, %s154
      %s156 = sphi 0, %s154
      %s157 = sphi 0, %s156
      %s171 = sphi 0, %s157
      %s175 = sphi 0, %s175
      %s177 = sphi 0, %s175
      %s178 = sphi 0, %s177
      %s192 = sphi 0, %s178
      %s196 = sphi 0, %s196
      %s198 = sphi 0, %s196
      %s199 = sphi 0, %s198
      %s213 = sphi 0, %s199
      %s217 = sphi 0, %s217
      %s219 = sphi 0, %s217
      %s220 = sphi 0, %s219
      %s234 = sphi 0, %s220
      %s238 = sphi 0, %s238
      %s240 = sphi 0, %s238
      %s241 = sphi 0, %s240
      %s255 = sphi 0, %s241
      %s259 = sphi 0, %s259
      %s261 = sphi 0, %s259
      %s262 = sphi 0, %s261
      %s276 = sphi 0, %s262
      %s280 = sphi 0, %s280
      %s282 = sphi 0, %s280
      %s283 = sphi 0, %s282
      %s297 = sphi 0, %s283
      %s301 = sphi 0, %s301
      %s303 = sphi 0, %s301
      %s304 = sphi 0, %s303
      %s318 = sphi 0, %s304
      %s324 = sphi 0, %s326
      %s327 = sphi 0, %s324
      %s328 = sphi 0, %s327
      %s344 = sphi 0, %s328
    $region4: #{tpu_custom_call.1} parent=1 // loop_header_branch
      %39 = sbr.rel (%p37) target = $region8
    $region5: #{tpu_custom_call.1} parent=1 // loop_body
      %s41 = ssub.s32 %s36, 1
      %s42 = ssub.s32 %s36, 2
      %s43 = sadd.s32 %s36, 1
      %s44 = ssub.s32 %s36, %s43
      %p45 = scmp.eq.s32.totalorder %s44, 0
      %s47 = sadd.s32 %s46, 1
      %s48 = scalar_select %p45, %s46, %s47
      %p51 = pneg %p45
      %p52 = scmp.eq.s32.totalorder %s36, 1
      %p53 = por %p51, %p52
      %p54 = scmp.ne.s32.totalorder %s46, %s49
      %p55 = scmp.eq.s32.totalorder %s36, 0
      %p56 = por %p54, %p55
      %p57 = scmp.ne.s32.totalorder %s46, %s49
      %p58 = scmp.eq.s32.totalorder %s41, 1
      %p59 = por %p57, %p58
      %p60 = scmp.ne.s32.totalorder %s49, %s50
      %p61 = scmp.eq.s32.totalorder %s41, 0
      %p62 = por %p60, %p61
      %p63 = scmp.ne.s32.totalorder %s49, %s50
      %p64 = scmp.eq.s32.totalorder %s42, 1
      %p65 = por %p63, %p64
      %p67 = scmp.ne.s32.totalorder %s50, %s66
      %p68 = scmp.eq.s32.totalorder %s42, 0
      %p69 = por %p67, %p68
      %s71 = sadd.s32 %s70, 1
      %p74 = scmp.eq.s32.totalorder %s36, 1
      %p75 = scmp.ne.s32.totalorder %s70, %s72
      %p76 = scmp.eq.s32.totalorder %s36, 0
      %p77 = por %p75, %p76
      %p78 = scmp.ne.s32.totalorder %s70, %s72
      %p79 = scmp.eq.s32.totalorder %s41, 1
      %p80 = por %p78, %p79
      %p81 = scmp.ne.s32.totalorder %s72, %s73
      %p82 = scmp.eq.s32.totalorder %s41, 0
      %p83 = por %p81, %p82
      %p84 = scmp.ne.s32.totalorder %s72, %s73
      %p85 = scmp.eq.s32.totalorder %s42, 1
      %p86 = por %p84, %p85
      %p88 = scmp.ne.s32.totalorder %s73, %s87
      %p89 = scmp.eq.s32.totalorder %s42, 0
      %p90 = por %p88, %p89
      %s92 = sadd.s32 %s91, 1
      %p95 = scmp.eq.s32.totalorder %s36, 1
      %p96 = scmp.ne.s32.totalorder %s91, %s93
      %p97 = scmp.eq.s32.totalorder %s36, 0
      %p98 = por %p96, %p97
      %p99 = scmp.ne.s32.totalorder %s91, %s93
      %p100 = scmp.eq.s32.totalorder %s41, 1
      %p101 = por %p99, %p100
      %p102 = scmp.ne.s32.totalorder %s93, %s94
      %p103 = scmp.eq.s32.totalorder %s41, 0
      %p104 = por %p102, %p103
      %p105 = scmp.ne.s32.totalorder %s93, %s94
      %p106 = scmp.eq.s32.totalorder %s42, 1
      %p107 = por %p105, %p106
      %p109 = scmp.ne.s32.totalorder %s94, %s108
      %p110 = scmp.eq.s32.totalorder %s42, 0
      %p111 = por %p109, %p110
      %s113 = sadd.s32 %s112, 1
      %p116 = scmp.eq.s32.totalorder %s36, 1
      %p117 = scmp.ne.s32.totalorder %s112, %s114
      %p118 = scmp.eq.s32.totalorder %s36, 0
      %p119 = por %p117, %p118
      %p120 = scmp.ne.s32.totalorder %s112, %s114
      %p121 = scmp.eq.s32.totalorder %s41, 1
      %p122 = por %p120, %p121
      %p123 = scmp.ne.s32.totalorder %s114, %s115
      %p124 = scmp.eq.s32.totalorder %s41, 0
      %p125 = por %p123, %p124
      %p126 = scmp.ne.s32.totalorder %s114, %s115
      %p127 = scmp.eq.s32.totalorder %s42, 1
      %p128 = por %p126, %p127
      %p130 = scmp.ne.s32.totalorder %s115, %s129
      %p131 = scmp.eq.s32.totalorder %s42, 0
      %p132 = por %p130, %p131
      %s134 = sadd.s32 %s133, 1
      %p137 = scmp.eq.s32.totalorder %s36, 1
      %p138 = scmp.ne.s32.totalorder %s133, %s135
      %p139 = scmp.eq.s32.totalorder %s36, 0
      %p140 = por %p138, %p139
      %p141 = scmp.ne.s32.totalorder %s133, %s135
      %p142 = scmp.eq.s32.totalorder %s41, 1
      %p143 = por %p141, %p142
      %p144 = scmp.ne.s32.totalorder %s135, %s136
      %p145 = scmp.eq.s32.totalorder %s41, 0
      %p146 = por %p144, %p145
      %p147 = scmp.ne.s32.totalorder %s135, %s136
      %p148 = scmp.eq.s32.totalorder %s42, 1
      %p149 = por %p147, %p148
      %p151 = scmp.ne.s32.totalorder %s136, %s150
      %p152 = scmp.eq.s32.totalorder %s42, 0
      %p153 = por %p151, %p152
      %s155 = sadd.s32 %s154, 1
      %p158 = scmp.eq.s32.totalorder %s36, 1
      %p159 = scmp.ne.s32.totalorder %s154, %s156
      %p160 = scmp.eq.s32.totalorder %s36, 0
      %p161 = por %p159, %p160
      %p162 = scmp.ne.s32.totalorder %s154, %s156
      %p163 = scmp.eq.s32.totalorder %s41, 1
      %p164 = por %p162, %p163
      %p165 = scmp.ne.s32.totalorder %s156, %s157
      %p166 = scmp.eq.s32.totalorder %s41, 0
      %p167 = por %p165, %p166
      %p168 = scmp.ne.s32.totalorder %s156, %s157
      %p169 = scmp.eq.s32.totalorder %s42, 1
      %p170 = por %p168, %p169
      %p172 = scmp.ne.s32.totalorder %s157, %s171
      %p173 = scmp.eq.s32.totalorder %s42, 0
      %p174 = por %p172, %p173
      %s176 = sadd.s32 %s175, 1
      %p179 = scmp.eq.s32.totalorder %s36, 1
      %p180 = scmp.ne.s32.totalorder %s175, %s177
      %p181 = scmp.eq.s32.totalorder %s36, 0
      %p182 = por %p180, %p181
      %p183 = scmp.ne.s32.totalorder %s175, %s177
      %p184 = scmp.eq.s32.totalorder %s41, 1
      %p185 = por %p183, %p184
      %p186 = scmp.ne.s32.totalorder %s177, %s178
      %p187 = scmp.eq.s32.totalorder %s41, 0
      %p188 = por %p186, %p187
      %p189 = scmp.ne.s32.totalorder %s177, %s178
      %p190 = scmp.eq.s32.totalorder %s42, 1
      %p191 = por %p189, %p190
      %p193 = scmp.ne.s32.totalorder %s178, %s192
      %p194 = scmp.eq.s32.totalorder %s42, 0
      %p195 = por %p193, %p194
      %s197 = sadd.s32 %s196, 1
      %p200 = scmp.eq.s32.totalorder %s36, 1
      %p201 = scmp.ne.s32.totalorder %s196, %s198
      %p202 = scmp.eq.s32.totalorder %s36, 0
      %p203 = por %p201, %p202
      %p204 = scmp.ne.s32.totalorder %s196, %s198
      %p205 = scmp.eq.s32.totalorder %s41, 1
      %p206 = por %p204, %p205
      %p207 = scmp.ne.s32.totalorder %s198, %s199
      %p208 = scmp.eq.s32.totalorder %s41, 0
      %p209 = por %p207, %p208
      %p210 = scmp.ne.s32.totalorder %s198, %s199
      %p211 = scmp.eq.s32.totalorder %s42, 1
      %p212 = por %p210, %p211
      %p214 = scmp.ne.s32.totalorder %s199, %s213
      %p215 = scmp.eq.s32.totalorder %s42, 0
      %p216 = por %p214, %p215
      %s218 = sadd.s32 %s217, 1
      %p221 = scmp.eq.s32.totalorder %s36, 1
      %p222 = scmp.ne.s32.totalorder %s217, %s219
      %p223 = scmp.eq.s32.totalorder %s36, 0
      %p224 = por %p222, %p223
      %p225 = scmp.ne.s32.totalorder %s217, %s219
      %p226 = scmp.eq.s32.totalorder %s41, 1
      %p227 = por %p225, %p226
      %p228 = scmp.ne.s32.totalorder %s219, %s220
      %p229 = scmp.eq.s32.totalorder %s41, 0
      %p230 = por %p228, %p229
      %p231 = scmp.ne.s32.totalorder %s219, %s220
      %p232 = scmp.eq.s32.totalorder %s42, 1
      %p233 = por %p231, %p232
      %p235 = scmp.ne.s32.totalorder %s220, %s234
      %p236 = scmp.eq.s32.totalorder %s42, 0
      %p237 = por %p235, %p236
      %s239 = sadd.s32 %s238, 1
      %p242 = scmp.eq.s32.totalorder %s36, 1
      %p243 = scmp.ne.s32.totalorder %s238, %s240
      %p244 = scmp.eq.s32.totalorder %s36, 0
      %p245 = por %p243, %p244
      %p246 = scmp.ne.s32.totalorder %s238, %s240
      %p247 = scmp.eq.s32.totalorder %s41, 1
      %p248 = por %p246, %p247
      %p249 = scmp.ne.s32.totalorder %s240, %s241
      %p250 = scmp.eq.s32.totalorder %s41, 0
      %p251 = por %p249, %p250
      %p252 = scmp.ne.s32.totalorder %s240, %s241
      %p253 = scmp.eq.s32.totalorder %s42, 1
      %p254 = por %p252, %p253
      %p256 = scmp.ne.s32.totalorder %s241, %s255
      %p257 = scmp.eq.s32.totalorder %s42, 0
      %p258 = por %p256, %p257
      %s260 = sadd.s32 %s259, 1
      %p263 = scmp.eq.s32.totalorder %s36, 1
      %p264 = scmp.ne.s32.totalorder %s259, %s261
      %p265 = scmp.eq.s32.totalorder %s36, 0
      %p266 = por %p264, %p265
      %p267 = scmp.ne.s32.totalorder %s259, %s261
      %p268 = scmp.eq.s32.totalorder %s41, 1
      %p269 = por %p267, %p268
      %p270 = scmp.ne.s32.totalorder %s261, %s262
      %p271 = scmp.eq.s32.totalorder %s41, 0
      %p272 = por %p270, %p271
      %p273 = scmp.ne.s32.totalorder %s261, %s262
      %p274 = scmp.eq.s32.totalorder %s42, 1
      %p275 = por %p273, %p274
      %p277 = scmp.ne.s32.totalorder %s262, %s276
      %p278 = scmp.eq.s32.totalorder %s42, 0
      %p279 = por %p277, %p278
      %s281 = sadd.s32 %s280, 1
      %p284 = scmp.eq.s32.totalorder %s36, 1
      %p285 = scmp.ne.s32.totalorder %s280, %s282
      %p286 = scmp.eq.s32.totalorder %s36, 0
      %p287 = por %p285, %p286
      %p288 = scmp.ne.s32.totalorder %s280, %s282
      %p289 = scmp.eq.s32.totalorder %s41, 1
      %p290 = por %p288, %p289
      %p291 = scmp.ne.s32.totalorder %s282, %s283
      %p292 = scmp.eq.s32.totalorder %s41, 0
      %p293 = por %p291, %p292
      %p294 = scmp.ne.s32.totalorder %s282, %s283
      %p295 = scmp.eq.s32.totalorder %s42, 1
      %p296 = por %p294, %p295
      %p298 = scmp.ne.s32.totalorder %s283, %s297
      %p299 = scmp.eq.s32.totalorder %s42, 0
      %p300 = por %p298, %p299
      %s302 = sadd.s32 %s301, 1
      %p305 = scmp.eq.s32.totalorder %s36, 1
      %p306 = scmp.ne.s32.totalorder %s301, %s303
      %p307 = scmp.eq.s32.totalorder %s36, 0
      %p308 = por %p306, %p307
      %p309 = scmp.ne.s32.totalorder %s301, %s303
      %p310 = scmp.eq.s32.totalorder %s41, 1
      %p311 = por %p309, %p310
      %p312 = scmp.ne.s32.totalorder %s303, %s304
      %p313 = scmp.eq.s32.totalorder %s41, 0
      %p314 = por %p312, %p313
      %p315 = scmp.ne.s32.totalorder %s303, %s304
      %p316 = scmp.eq.s32.totalorder %s42, 1
      %p317 = por %p315, %p316
      %p319 = scmp.ne.s32.totalorder %s304, %s318
      %p320 = scmp.eq.s32.totalorder %s42, 0
      %p321 = por %p319, %p320
      %s322 = ssub.s32 %s36, %s43
      %p323 = scmp.eq.s32.totalorder %s322, 0
      %s325 = sadd.s32 %s324, 1
      %s326 = scalar_select %p323, %s324, %s325
      %p329 = pneg %p323
      %p330 = scmp.eq.s32.totalorder %s36, 1
      %p331 = por %p329, %p330
      %p332 = scmp.ne.s32.totalorder %s324, %s327
      %p333 = scmp.eq.s32.totalorder %s36, 0
      %p334 = por %p332, %p333
      %p335 = scmp.ne.s32.totalorder %s324, %s327
      %p336 = scmp.eq.s32.totalorder %s41, 1
      %p337 = por %p335, %p336
      %p338 = scmp.ne.s32.totalorder %s327, %s328
      %p339 = scmp.eq.s32.totalorder %s41, 0
      %p340 = por %p338, %p339
      %p341 = scmp.ne.s32.totalorder %s327, %s328
      %p342 = scmp.eq.s32.totalorder %s42, 1
      %p343 = por %p341, %p342
      %p345 = scmp.ne.s32.totalorder %s328, %s344
      %p346 = scmp.eq.s32.totalorder %s42, 0
      %p347 = por %p345, %p346
      %p348 = scmp.le.s32.totalorder 1, %s36
      %p349 = scmp.lt.s32.totalorder %s36, 3
      %p350 = pnand %p348, %p349
      %p351 = pneg %p350
      // Predicated region
      $region9: #{tpu_custom_call.1} parent=5 // pred_check
        _
      $region10: #{tpu_custom_call.1} parent=5 // pred_check_branch
        %353 = sbr.rel (%p350) target = $region12
      $region11: #{tpu_custom_call.1} parent=5 // pred_region
        %s354 = ssub.s32 %s36, 1
        // Predicated region
        $region13: #{tpu_custom_call.1} parent=11 // pred_check
          %p355 = pneg %p83
        $region14: #{tpu_custom_call.1} parent=11 // pred_check_branch
          %357 = sbr.rel (%p355) target = $region16
        $region15: #{tpu_custom_call.1} parent=11 // pred_region
          %s359 = ssub.s32 256, 256
          %360 = vsyncadd [#allocation8], %s359
          %s361 = sshll.u32 [#allocation7], 4
          %s362 = int_to_ptr.vmem [resolvable:$true] %s361
          %367 = dma.hbm_to_vmem [thread:$0]  %s2, 256, %s362, [#allocation8], 64, 64, 4
        $region16: #{tpu_custom_call.1} parent=11 // pred_fallthru
          _
        // Predicated region
        $region17: #{tpu_custom_call.1} parent=11 // pred_check
          %p368 = pneg %p104
        $region18: #{tpu_custom_call.1} parent=11 // pred_check_branch
          %370 = sbr.rel (%p368) target = $region20
        $region19: #{tpu_custom_call.1} parent=11 // pred_region
          %s372 = ssub.s32 16, 16
          %373 = vsyncadd [#allocation8], %s372
          %s375 = sshll.u32 [#allocation9], 4
          %s376 = int_to_ptr.vmem [resolvable:$true] %s375
          %378 = dma.hbm_to_vmem [thread:$0]  %s3, 16, %s376, [#allocation8]
        $region20: #{tpu_custom_call.1} parent=11 // pred_fallthru
          _
        // Predicated region
        $region21: #{tpu_custom_call.1} parent=11 // pred_check
          %p379 = pneg %p125
        $region22: #{tpu_custom_call.1} parent=11 // pred_check_branch
          %381 = sbr.rel (%p379) target = $region24
        $region23: #{tpu_custom_call.1} parent=11 // pred_region
          %s383 = ssub.s32 256, 256
          %384 = vsyncadd [#allocation11], %s383
          %s385 = sshll.u32 [#allocation10], 4
          %s386 = int_to_ptr.vmem [resolvable:$true] %s385
          %391 = dma.hbm_to_vmem [thread:$0]  %s4, 256, %s386, [#allocation11], 64, 64, 4
        $region24: #{tpu_custom_call.1} parent=11 // pred_fallthru
          _
        // Predicated region
        $region25: #{tpu_custom_call.1} parent=11 // pred_check
          %p392 = pneg %p146
        $region26: #{tpu_custom_call.1} parent=11 // pred_check_branch
          %394 = sbr.rel (%p392) target = $region28
        $region27: #{tpu_custom_call.1} parent=11 // pred_region
          %s396 = ssub.s32 16, 16
          %397 = vsyncadd [#allocation11], %s396
          %s399 = sshll.u32 [#allocation12], 4
          %s400 = int_to_ptr.vmem [resolvable:$true] %s399
          %402 = dma.hbm_to_vmem [thread:$0]  %s5, 16, %s400, [#allocation11]
        $region28: #{tpu_custom_call.1} parent=11 // pred_fallthru
          _
        // Predicated region
        $region29: #{tpu_custom_call.1} parent=11 // pred_check
          %p403 = pneg %p167
        $region30: #{tpu_custom_call.1} parent=11 // pred_check_branch
          %405 = sbr.rel (%p403) target = $region32
        $region31: #{tpu_custom_call.1} parent=11 // pred_region
          %s407 = ssub.s32 16, 16
          %408 = vsyncadd [#allocation14], %s407
          %s410 = sshll.u32 [#allocation13], 4
          %s411 = int_to_ptr.vmem [resolvable:$true] %s410
          %413 = dma.hbm_to_vmem [thread:$0]  %s6, 16, %s411, [#allocation14]
        $region32: #{tpu_custom_call.1} parent=11 // pred_fallthru
          _
        // Predicated region
        $region33: #{tpu_custom_call.1} parent=11 // pred_check
          %p414 = pneg %p188
        $region34: #{tpu_custom_call.1} parent=11 // pred_check_branch
          %416 = sbr.rel (%p414) target = $region36
        $region35: #{tpu_custom_call.1} parent=11 // pred_region
          %s418 = ssub.s32 16, 16
          %419 = vsyncadd [#allocation14], %s418
          %s421 = sshll.u32 [#allocation15], 4
          %s422 = int_to_ptr.vmem [resolvable:$true] %s421
          %424 = dma.hbm_to_vmem [thread:$0]  %s7, 16, %s422, [#allocation14]
        $region36: #{tpu_custom_call.1} parent=11 // pred_fallthru
          _
        // Predicated region
        $region37: #{tpu_custom_call.1} parent=11 // pred_check
          %p425 = pneg %p209
        $region38: #{tpu_custom_call.1} parent=11 // pred_check_branch
          %427 = sbr.rel (%p425) target = $region40
        $region39: #{tpu_custom_call.1} parent=11 // pred_region
          %s429 = ssub.s32 256, 256
          %430 = vsyncadd [#allocation17], %s429
          %s431 = sshll.u32 [#allocation16], 4
          %s432 = int_to_ptr.vmem [resolvable:$true] %s431
          %437 = dma.hbm_to_vmem [thread:$0]  %s8, 256, %s432, [#allocation17], 64, 64, 4
        $region40: #{tpu_custom_call.1} parent=11 // pred_fallthru
          _
        // Predicated region
        $region41: #{tpu_custom_call.1} parent=11 // pred_check
          %p438 = pneg %p230
        $region42: #{tpu_custom_call.1} parent=11 // pred_check_branch
          %440 = sbr.rel (%p438) target = $region44
        $region43: #{tpu_custom_call.1} parent=11 // pred_region
          %s442 = ssub.s32 16, 16
          %443 = vsyncadd [#allocation17], %s442
          %s445 = sshll.u32 [#allocation18], 4
          %s446 = int_to_ptr.vmem [resolvable:$true] %s445
          %448 = dma.hbm_to_vmem [thread:$0]  %s9, 16, %s446, [#allocation17]
        $region44: #{tpu_custom_call.1} parent=11 // pred_fallthru
          _
        // Predicated region
        $region45: #{tpu_custom_call.1} parent=11 // pred_check
          %p449 = pneg %p251
        $region46: #{tpu_custom_call.1} parent=11 // pred_check_branch
          %451 = sbr.rel (%p449) target = $region48
        $region47: #{tpu_custom_call.1} parent=11 // pred_region
          %s453 = ssub.s32 512, 512
          %454 = vsyncadd [#allocation20], %s453
          %s455 = sshll.u32 [#allocation19], 4
          %s456 = int_to_ptr.vmem [resolvable:$true] %s455
          %461 = dma.hbm_to_vmem [thread:$0]  %s10, 512, %s456, [#allocation20], 64, 64, 4
        $region48: #{tpu_custom_call.1} parent=11 // pred_fallthru
          _
        // Predicated region
        $region49: #{tpu_custom_call.1} parent=11 // pred_check
          %p462 = pneg %p272
        $region50: #{tpu_custom_call.1} parent=11 // pred_check_branch
          %464 = sbr.rel (%p462) target = $region52
        $region51: #{tpu_custom_call.1} parent=11 // pred_region
          %s466 = ssub.s32 16, 16
          %467 = vsyncadd [#allocation20], %s466
          %s469 = sshll.u32 [#allocation21], 4
          %s470 = int_to_ptr.vmem [resolvable:$true] %s469
          %472 = dma.hbm_to_vmem [thread:$0]  %s11, 16, %s470, [#allocation20]
        $region52: #{tpu_custom_call.1} parent=11 // pred_fallthru
          _
        // Predicated region
        $region53: #{tpu_custom_call.1} parent=11 // pred_check
          %p473 = pneg %p293
        $region54: #{tpu_custom_call.1} parent=11 // pred_check_branch
          %475 = sbr.rel (%p473) target = $region56
        $region55: #{tpu_custom_call.1} parent=11 // pred_region
          %s477 = ssub.s32 16, 16
          %478 = vsyncadd [#allocation23], %s477
          %s480 = sshll.u32 [#allocation22], 4
          %s481 = int_to_ptr.vmem [resolvable:$true] %s480
          %483 = dma.hbm_to_vmem [thread:$0]  %s12, 16, %s481, [#allocation23]
        $region56: #{tpu_custom_call.1} parent=11 // pred_fallthru
          _
        // Predicated region
        $region57: #{tpu_custom_call.1} parent=11 // pred_check
          %p484 = pneg %p314
        $region58: #{tpu_custom_call.1} parent=11 // pred_check_branch
          %486 = sbr.rel (%p484) target = $region60
        $region59: #{tpu_custom_call.1} parent=11 // pred_region
          %s488 = ssub.s32 16, 16
          %489 = vsyncadd [#allocation23], %s488
          %s491 = sshll.u32 [#allocation24], 4
          %s492 = int_to_ptr.vmem [resolvable:$true] %s491
          %494 = dma.hbm_to_vmem [thread:$0]  %s13, 16, %s492, [#allocation23]
        $region60: #{tpu_custom_call.1} parent=11 // pred_fallthru
          _
      $region12: #{tpu_custom_call.1} parent=5 // pred_fallthru
        _
      %p495 = scmp.lt.s32.totalorder %s36, 2
      // Predicated region
      $region61: #{tpu_custom_call.1} parent=5 // pred_check
        %p496 = pneg %p495
      $region62: #{tpu_custom_call.1} parent=5 // pred_check_branch
        %498 = sbr.rel (%p496) target = $region64
      $region63: #{tpu_custom_call.1} parent=5 // pred_region
        // Predicated region
        $region65: #{tpu_custom_call.1} parent=63 // pred_check
          %p499 = pneg %p56
        $region66: #{tpu_custom_call.1} parent=63 // pred_check_branch
          %501 = sbr.rel (%p499) target = $region68
        $region67: #{tpu_custom_call.1} parent=63 // pred_region
          %s502 = sand.u32 %s46, 1
          %s503 = scalar_lea.sflag [#allocation5], %s502
          %s504 = sand.u32 %s46, 1
          %s505 = smul.addr %s504, 8
          %s506 = scalar_lea.vmem [#allocation4], %s505
          %s508 = ssub.s32 128, 128
          %509 = vsyncadd %s503, %s508
          %s510 = smul.addr %s36, 128
          %s511 = scalar_lea.hbm %s1, %s510
          %s513 = sshll.u32 %s506, 4
          %s514 = int_to_ptr.vmem [resolvable:$true] %s513
          %516 = dma.hbm_to_vmem [thread:$0]  %s511, 128, %s514, %s503
        $region68: #{tpu_custom_call.1} parent=63 // pred_fallthru
          _
      $region64: #{tpu_custom_call.1} parent=5 // pred_fallthru
        _
      %p517 = scmp.le.s32.totalorder 1, %s36
      %p518 = scmp.lt.s32.totalorder %s36, 3
      %p519 = pnand %p517, %p518
      %p520 = pneg %p519
      // Predicated region
      $region69: #{tpu_custom_call.1} parent=5 // pred_check
        _
      $region70: #{tpu_custom_call.1} parent=5 // pred_check_branch
        %522 = sbr.rel (%p519) target = $region72
      $region71: #{tpu_custom_call.1} parent=5 // pred_region
        %s523 = ssub.s32 %s36, 1
        %s524 = sand.u32 %s49, 1
        %s525 = scalar_lea.sflag [#allocation5], %s524
        %s526 = sand.u32 %s49, 1
        %s527 = smul.addr %s526, 8
        %s528 = scalar_lea.vmem [#allocation4], %s527
        // Predicated region
        $region73: #{tpu_custom_call.1} parent=71 // pred_check
          %p529 = pneg %p62
        $region74: #{tpu_custom_call.1} parent=71 // pred_check_branch
          %531 = sbr.rel (%p529) target = $region76
        $region75: #{tpu_custom_call.1} parent=71 // pred_region
          %532 = dma.done %s525, 128
        $region76: #{tpu_custom_call.1} parent=71 // pred_fallthru
          _
        // Predicated region
        $region77: #{tpu_custom_call.1} parent=71 // pred_check
          %p533 = pneg %p83
        $region78: #{tpu_custom_call.1} parent=71 // pred_check_branch
          %535 = sbr.rel (%p533) target = $region80
        $region79: #{tpu_custom_call.1} parent=71 // pred_region
          %536 = dma.done [#allocation8], 256
        $region80: #{tpu_custom_call.1} parent=71 // pred_fallthru
          _
        // Predicated region
        $region81: #{tpu_custom_call.1} parent=71 // pred_check
          %p537 = pneg %p104
        $region82: #{tpu_custom_call.1} parent=71 // pred_check_branch
          %539 = sbr.rel (%p537) target = $region84
        $region83: #{tpu_custom_call.1} parent=71 // pred_region
          %540 = dma.done [#allocation8], 16
        $region84: #{tpu_custom_call.1} parent=71 // pred_fallthru
          _
        // Predicated region
        $region85: #{tpu_custom_call.1} parent=71 // pred_check
          %p541 = pneg %p125
        $region86: #{tpu_custom_call.1} parent=71 // pred_check_branch
          %543 = sbr.rel (%p541) target = $region88
        $region87: #{tpu_custom_call.1} parent=71 // pred_region
          %544 = dma.done [#allocation11], 256
        $region88: #{tpu_custom_call.1} parent=71 // pred_fallthru
          _
        // Predicated region
        $region89: #{tpu_custom_call.1} parent=71 // pred_check
          %p545 = pneg %p146
        $region90: #{tpu_custom_call.1} parent=71 // pred_check_branch
          %547 = sbr.rel (%p545) target = $region92
        $region91: #{tpu_custom_call.1} parent=71 // pred_region
          %548 = dma.done [#allocation11], 16
        $region92: #{tpu_custom_call.1} parent=71 // pred_fallthru
          _
        // Predicated region
        $region93: #{tpu_custom_call.1} parent=71 // pred_check
          %p549 = pneg %p167
        $region94: #{tpu_custom_call.1} parent=71 // pred_check_branch
          %551 = sbr.rel (%p549) target = $region96
        $region95: #{tpu_custom_call.1} parent=71 // pred_region
          %552 = dma.done [#allocation14], 16
        $region96: #{tpu_custom_call.1} parent=71 // pred_fallthru
          _
        // Predicated region
        $region97: #{tpu_custom_call.1} parent=71 // pred_check
          %p553 = pneg %p188
        $region98: #{tpu_custom_call.1} parent=71 // pred_check_branch
          %555 = sbr.rel (%p553) target = $region100
        $region99: #{tpu_custom_call.1} parent=71 // pred_region
          %556 = dma.done [#allocation14], 16
        $region100: #{tpu_custom_call.1} parent=71 // pred_fallthru
          _
        // Predicated region
        $region101: #{tpu_custom_call.1} parent=71 // pred_check
          %p557 = pneg %p209
        $region102: #{tpu_custom_call.1} parent=71 // pred_check_branch
          %559 = sbr.rel (%p557) target = $region104
        $region103: #{tpu_custom_call.1} parent=71 // pred_region
          %560 = dma.done [#allocation17], 256
        $region104: #{tpu_custom_call.1} parent=71 // pred_fallthru
          _
        // Predicated region
        $region105: #{tpu_custom_call.1} parent=71 // pred_check
          %p561 = pneg %p230
        $region106: #{tpu_custom_call.1} parent=71 // pred_check_branch
          %563 = sbr.rel (%p561) target = $region108
        $region107: #{tpu_custom_call.1} parent=71 // pred_region
          %564 = dma.done [#allocation17], 16
        $region108: #{tpu_custom_call.1} parent=71 // pred_fallthru
          _
        // Predicated region
        $region109: #{tpu_custom_call.1} parent=71 // pred_check
          %p565 = pneg %p251
        $region110: #{tpu_custom_call.1} parent=71 // pred_check_branch
          %567 = sbr.rel (%p565) target = $region112
        $region111: #{tpu_custom_call.1} parent=71 // pred_region
          %568 = dma.done [#allocation20], 512
        $region112: #{tpu_custom_call.1} parent=71 // pred_fallthru
          _
        // Predicated region
        $region113: #{tpu_custom_call.1} parent=71 // pred_check
          %p569 = pneg %p272
        $region114: #{tpu_custom_call.1} parent=71 // pred_check_branch
          %571 = sbr.rel (%p569) target = $region116
        $region115: #{tpu_custom_call.1} parent=71 // pred_region
          %572 = dma.done [#allocation20], 16
        $region116: #{tpu_custom_call.1} parent=71 // pred_fallthru
          _
        // Predicated region
        $region117: #{tpu_custom_call.1} parent=71 // pred_check
          %p573 = pneg %p293
        $region118: #{tpu_custom_call.1} parent=71 // pred_check_branch
          %575 = sbr.rel (%p573) target = $region120
        $region119: #{tpu_custom_call.1} parent=71 // pred_region
          %576 = dma.done [#allocation23], 16
        $region120: #{tpu_custom_call.1} parent=71 // pred_fallthru
          _
        // Predicated region
        $region121: #{tpu_custom_call.1} parent=71 // pred_check
          %p577 = pneg %p314
        $region122: #{tpu_custom_call.1} parent=71 // pred_check_branch
          %579 = sbr.rel (%p577) target = $region124
        $region123: #{tpu_custom_call.1} parent=71 // pred_region
          %580 = dma.done [#allocation23], 16
        $region124: #{tpu_custom_call.1} parent=71 // pred_fallthru
          _
        %s581 = sand.u32 %s49, 1
        %s582 = scalar_lea.sflag [#allocation5], %s581
        %s583 = sand.u32 %s49, 1
        %s584 = smul.addr %s583, 8
        %s585 = scalar_lea.vmem [#allocation4], %s584
        %p586 = pneg %p62
        %p587 = pneg %p59
        %p588 = pneg %p83
        %p589 = pneg %p80
        %p590 = pneg %p104
        %p591 = pneg %p101
        %p592 = pneg %p125
        %p593 = pneg %p122
        %p594 = pneg %p146
        %p595 = pneg %p143
        %p596 = pneg %p167
        %p597 = pneg %p164
        %p598 = pneg %p188
        %p599 = pneg %p185
        %p600 = pneg %p209
        %p601 = pneg %p206
        %p602 = pneg %p230
        %p603 = pneg %p227
        %p604 = pneg %p251
        %p605 = pneg %p248
        %p606 = pneg %p272
        %p607 = pneg %p269
        %p608 = pneg %p293
        %p609 = pneg %p290
        %p610 = pneg %p314
        %p611 = pneg %p311
        %p612 = pneg %p340
        %p613 = pneg %p337
        %s614 = sand.u32 %s327, 1
        %s615 = scalar_lea.sflag [#allocation6], %s614
        %s616 = sand.u32 %s327, 1
        %s617 = smul.addr %s616, 8
        %s618 = scalar_lea.vmem [#allocation25], %s617
        %v620 = vld [vmem:[%s528] sm:$0xff]
        %v621 = vpack.c.bf16 %v620, %v620
        %v622 = vld [vmem:[#allocation7] sm:$0xf]
        %v623 = vld [vmem:[#allocation7 + $0x4] sm:$0xf]
        %v624 = vld [vmem:[#allocation7 + $0x8] sm:$0xf]
        %v625 = vld [vmem:[#allocation7 + $0xc] sm:$0xf]
        %v626 = vld [vmem:[#allocation9] sm:$0x1]
        %v628 = vlaneseq
        %v629 = vshrl.u32 %v628, 7
        %v630 = vsub.s32 0, %v629
        %v631 = vrot.slane %v626, %v630
        %v637 = vunpack.c.l.b16 %v622
        %v638 = vunpack.c.l.b16 %v623
        %v639 = vunpack.c.l.b16 %v624
        %v640 = vunpack.c.l.b16 %v625
        %v641 = vpack.c.b16 %v638, %v637
        %v642 = vpack.c.b16 %v640, %v639
        %vm645 = vcmask 261120
        %v647 = vsel %vm645, %v621, 0
        %649 = vmatprep.subr.bf16.mxu0 0
        %650 = vmatpush1.bf16.msra.mxu0 %v641
        %651 = vmatprep.subr.bf16.mxu0 0
        %652 = vmatpush1.bf16.msra.mxu0 %v642
        %653 = vmatprep.subr.bf16.mxu0 0
        %654 = vmatpush1.bf16.msra.mxu0 0
        %655 = vmatprep.subr.bf16.mxu0 0
        %656 = vmatpush1.bf16.msra.mxu0 0
        %657 = vmatprep.subr.bf16.mxu0 0
        %658 = vmatpush1.bf16.msra.mxu0 0
        %659 = vmatprep.subr.bf16.mxu0 0
        %660 = vmatpush1.bf16.msra.mxu0 0
        %661 = vmatprep.subr.bf16.mxu0 0
        %662 = vmatpush1.bf16.msra.mxu0 0
        %663 = vmatprep.subr.bf16.mxu0 0
        %664 = vmatpush1.bf16.msra.mxu0 0
        %665 = vmatprep.subr.bf16.mxu0 0
        %666 = vmatpush1.bf16.msra.mxu0 0
        %667 = vmatprep.subr.bf16.mxu0 0
        %668 = vmatpush1.bf16.msra.mxu0 0
        %669 = vmatprep.subr.bf16.mxu0 0
        %670 = vmatpush1.bf16.msra.mxu0 0
        %671 = vmatprep.subr.bf16.mxu0 0
        %672 = vmatpush1.bf16.msra.mxu0 0
        %673 = vmatprep.subr.bf16.mxu0 0
        %674 = vmatpush1.bf16.msra.mxu0 0
        %675 = vmatprep.subr.bf16.mxu0 0
        %676 = vmatpush1.bf16.msra.mxu0 0
        %677 = vmatprep.subr.bf16.mxu0 0
        %678 = vmatpush1.bf16.msra.mxu0 0
        %679 = vmatprep.subr.bf16.mxu0 0
        %680 = vmatpush1.bf16.msra.mxu0 0
        %681 = vmatprep.mubr.bf16.mxu0 0
        %682 = vmatmul.mubr.bf16.gmra.mrb[0].mxu0 %v647
        %v683 = vpop.f32.mrb[0].mxu0
        %v684 = vadd.f32 %v631, %v683
        %v685 = vpop.f32.mrb[0].mxu0
        %v686 = vpop.f32.mrb[0].mxu0
        %v687 = vpop.f32.mrb[0].mxu0
        %688 = vdwg.mxu0
        %690 = vrot.lane.b32.xlu0 %v684, 112
        %v691 = vpop.permute.xlu0 %690
        %v693 = vpack.c.bf16 %v684, %v684
        %v694 = vpack.c.bf16 %v691, %v691
        %696 = vrot.lane.b32.xlu0 %v693, 96
        %v697 = vpop.permute.xlu0 %696
        %vm698 = vcmask 130048
        %v700 = vsel %vm698, %v693, 0
        %v703 = vsel %vm698, %v697, 0
        %705 = vmatprep.subr.bf16.mxu0 0
        %706 = vmatpush1.bf16.xpose.msra.mxu0 %v703
        %707 = vmatprep.subr.bf16.mxu0 0
        %708 = vmatpush1.bf16.xpose.msra.mxu0 0
        %709 = vmatprep.subr.bf16.mxu0 0
        %710 = vmatpush1.bf16.xpose.msra.mxu0 0
        %711 = vmatprep.subr.bf16.mxu0 0
        %712 = vmatpush1.bf16.xpose.msra.mxu0 0
        %713 = vmatprep.subr.bf16.mxu0 0
        %714 = vmatpush1.bf16.xpose.msra.mxu0 0
        %715 = vmatprep.subr.bf16.mxu0 0
        %716 = vmatpush1.bf16.xpose.msra.mxu0 0
        %717 = vmatprep.subr.bf16.mxu0 0
        %718 = vmatpush1.bf16.xpose.msra.mxu0 0
        %719 = vmatprep.subr.bf16.mxu0 0
        %720 = vmatpush1.bf16.xpose.msra.mxu0 0
        %721 = vmatprep.subr.bf16.mxu0 0
        %722 = vmatpush1.bf16.xpose.msra.mxu0 0
        %723 = vmatprep.subr.bf16.mxu0 0
        %724 = vmatpush1.bf16.xpose.msra.mxu0 0
        %725 = vmatprep.subr.bf16.mxu0 0
        %726 = vmatpush1.bf16.xpose.msra.mxu0 0
        %727 = vmatprep.subr.bf16.mxu0 0
        %728 = vmatpush1.bf16.xpose.msra.mxu0 0
        %729 = vmatprep.subr.bf16.mxu0 0
        %730 = vmatpush1.bf16.xpose.msra.mxu0 0
        %731 = vmatprep.subr.bf16.mxu0 0
        %732 = vmatpush1.bf16.xpose.msra.mxu0 0
        %733 = vmatprep.subr.bf16.mxu0 0
        %734 = vmatpush1.bf16.xpose.msra.mxu0 0
        %735 = vmatprep.subr.bf16.mxu0 0
        %736 = vmatpush1.bf16.xpose.msra.mxu0 0
        %737 = vmatprep.mubr.bf16.mxu0 0
        %738 = vmatmul.mubr.bf16.gmra.mrb[0].mxu0 %v700
        %v739 = vpop.f32.mrb[0].mxu0
        %v740 = vadd.f32 0.0, %v739
        %v741 = vpop.f32.mrb[0].mxu0
        %v742 = vpop.f32.mrb[0].mxu0
        %v743 = vpop.f32.mrb[0].mxu0
        %744 = vdwg.mxu0
        %746 = vrot.lane.b32.xlu0 %v694, 96
        %v747 = vpop.permute.xlu0 %746
        %v749 = vsel %vm698, %v694, 0
        %v752 = vsel %vm698, %v747, 0
        %754 = vmatprep.subr.bf16.mxu0 0
        %755 = vmatpush1.bf16.xpose.msra.mxu0 %v752
        %756 = vmatprep.subr.bf16.mxu0 0
        %757 = vmatpush1.bf16.xpose.msra.mxu0 0
        %758 = vmatprep.subr.bf16.mxu0 0
        %759 = vmatpush1.bf16.xpose.msra.mxu0 0
        %760 = vmatprep.subr.bf16.mxu0 0
        %761 = vmatpush1.bf16.xpose.msra.mxu0 0
        %762 = vmatprep.subr.bf16.mxu0 0
        %763 = vmatpush1.bf16.xpose.msra.mxu0 0
        %764 = vmatprep.subr.bf16.mxu0 0
        %765 = vmatpush1.bf16.xpose.msra.mxu0 0
        %766 = vmatprep.subr.bf16.mxu0 0
        %767 = vmatpush1.bf16.xpose.msra.mxu0 0
        %768 = vmatprep.subr.bf16.mxu0 0
        %769 = vmatpush1.bf16.xpose.msra.mxu0 0
        %770 = vmatprep.subr.bf16.mxu0 0
        %771 = vmatpush1.bf16.xpose.msra.mxu0 0
        %772 = vmatprep.subr.bf16.mxu0 0
        %773 = vmatpush1.bf16.xpose.msra.mxu0 0
        %774 = vmatprep.subr.bf16.mxu0 0
        %775 = vmatpush1.bf16.xpose.msra.mxu0 0
        %776 = vmatprep.subr.bf16.mxu0 0
        %777 = vmatpush1.bf16.xpose.msra.mxu0 0
        %778 = vmatprep.subr.bf16.mxu0 0
        %779 = vmatpush1.bf16.xpose.msra.mxu0 0
        %780 = vmatprep.subr.bf16.mxu0 0
        %781 = vmatpush1.bf16.xpose.msra.mxu0 0
        %782 = vmatprep.subr.bf16.mxu0 0
        %783 = vmatpush1.bf16.xpose.msra.mxu0 0
        %784 = vmatprep.subr.bf16.mxu0 0
        %785 = vmatpush1.bf16.xpose.msra.mxu0 0
        %786 = vmatprep.mubr.bf16.mxu0 0
        %787 = vmatmul.mubr.bf16.gmra.mrb[0].mxu0 %v749
        %v788 = vpop.f32.mrb[0].mxu0
        %v789 = vadd.f32 0.0, %v788
        %v790 = vpop.f32.mrb[0].mxu0
        %v791 = vpop.f32.mrb[0].mxu0
        %v792 = vpop.f32.mrb[0].mxu0
        %793 = vdwg.mxu0
        %v794 = vmul.f32 %v740, 0.25
        %v795 = vmul.f32 %v789, 0.25
        %v796 = vlaneseq
        %v797 = vand.u32 %v796, 127
        %s798 = sld [smem:[#allocation3 + %s41]]
        %v799 = vstv %s798
        %vm800 = vcmp.lt.s32.totalorder %v797, %v799
        %v801 = vsel %vm800, 1, 0
        %vm802 = vcmp.eq.s32.totalorder %v801, 1
        %v803 = vsel %vm802, %v794, -1000000.0
        %v804 = vsel %vm802, %v795, -1000000.0
        %vm805 = vcmask 64512
        %v806 = vsel %vm805, %v803, -inf
        %807 = vmax.xlane.f32.xlu0 %v806
        %v808 = vpop.xlane.xlu0 %807
        %v809 = vsel %vm805, %v804, -inf
        %810 = vmax.xlane.f32.xlu0 %v809
        %v811 = vpop.xlane.xlu0 %810
        %v812 = vsub.f32 %v803, %v808
        %v813 = vsub.f32 %v804, %v811
        %v814 = vmul.f32 %v812, 1.442695
        %v815 = vpow.pop %v814
        %v816 = vmul.f32 %v813, 1.442695
        %v817 = vpow.pop %v816
        %v818 = vsel %vm805, %v815, 0.0
        %819 = vadd.xlane.f32.xlu0 %v818
        %v820 = vpop.xlane.xlu0 %819
        %v821 = vsel %vm805, %v817, 0.0
        %822 = vadd.xlane.f32.xlu0 %v821
        %v823 = vpop.xlane.xlu0 %822
        %v824 = vrcp.pop %v820
        %v825 = vrcp.pop %v823
        %v826 = vmul.f32 %v815, %v824
        %v827 = vmul.f32 %v817, %v825
        %v828 = vpack.c.bf16 %v826, %v826
        %v829 = vpack.c.bf16 %v827, %v827
        %830 = vrot.lane.b32.xlu0 %v693, 64
        %v831 = vpop.permute.xlu0 %830
        %v833 = vsel %vm805, %v828, 0
        %vm835 = vcmask 1043456
        %v837 = vsel %vm835, %v831, 0
        %839 = vmatprep.subr.bf16.mxu0 0
        %840 = vmatpush1.bf16.msra.mxu0 %v837
        %841 = vmatprep.subr.bf16.mxu0 0
        %842 = vmatpush1.bf16.msra.mxu0 0
        %843 = vmatprep.subr.bf16.mxu0 0
        %844 = vmatpush1.bf16.msra.mxu0 0
        %845 = vmatprep.subr.bf16.mxu0 0
        %846 = vmatpush1.bf16.msra.mxu0 0
        %847 = vmatprep.subr.bf16.mxu0 0
        %848 = vmatpush1.bf16.msra.mxu0 0
        %849 = vmatprep.subr.bf16.mxu0 0
        %850 = vmatpush1.bf16.msra.mxu0 0
        %851 = vmatprep.subr.bf16.mxu0 0
        %852 = vmatpush1.bf16.msra.mxu0 0
        %853 = vmatprep.subr.bf16.mxu0 0
        %854 = vmatpush1.bf16.msra.mxu0 0
        %855 = vmatprep.subr.bf16.mxu0 0
        %856 = vmatpush1.bf16.msra.mxu0 0
        %857 = vmatprep.subr.bf16.mxu0 0
        %858 = vmatpush1.bf16.msra.mxu0 0
        %859 = vmatprep.subr.bf16.mxu0 0
        %860 = vmatpush1.bf16.msra.mxu0 0
        %861 = vmatprep.subr.bf16.mxu0 0
        %862 = vmatpush1.bf16.msra.mxu0 0
        %863 = vmatprep.subr.bf16.mxu0 0
        %864 = vmatpush1.bf16.msra.mxu0 0
        %865 = vmatprep.subr.bf16.mxu0 0
        %866 = vmatpush1.bf16.msra.mxu0 0
        %867 = vmatprep.subr.bf16.mxu0 0
        %868 = vmatpush1.bf16.msra.mxu0 0
        %869 = vmatprep.subr.bf16.mxu0 0
        %870 = vmatpush1.bf16.msra.mxu0 0
        %871 = vmatprep.mubr.bf16.mxu0 0
        %872 = vmatmul.mubr.bf16.gmra.mrb[0].mxu0 %v833
        %v873 = vpop.f32.mrb[0].mxu0
        %v874 = vadd.f32 0.0, %v873
        %v875 = vpop.f32.mrb[0].mxu0
        %v876 = vpop.f32.mrb[0].mxu0
        %v877 = vpop.f32.mrb[0].mxu0
        %878 = vdwg.mxu0
        %879 = vrot.lane.b32.xlu0 %v694, 64
        %v880 = vpop.permute.xlu0 %879
        %v882 = vsel %vm805, %v829, 0
        %v885 = vsel %vm835, %v880, 0
        %887 = vmatprep.subr.bf16.mxu0 0
        %888 = vmatpush1.bf16.msra.mxu0 %v885
        %889 = vmatprep.subr.bf16.mxu0 0
        %890 = vmatpush1.bf16.msra.mxu0 0
        %891 = vmatprep.subr.bf16.mxu0 0
        %892 = vmatpush1.bf16.msra.mxu0 0
        %893 = vmatprep.subr.bf16.mxu0 0
        %894 = vmatpush1.bf16.msra.mxu0 0
        %895 = vmatprep.subr.bf16.mxu0 0
        %896 = vmatpush1.bf16.msra.mxu0 0
        %897 = vmatprep.subr.bf16.mxu0 0
        %898 = vmatpush1.bf16.msra.mxu0 0
        %899 = vmatprep.subr.bf16.mxu0 0
        %900 = vmatpush1.bf16.msra.mxu0 0
        %901 = vmatprep.subr.bf16.mxu0 0
        %902 = vmatpush1.bf16.msra.mxu0 0
        %903 = vmatprep.subr.bf16.mxu0 0
        %904 = vmatpush1.bf16.msra.mxu0 0
        %905 = vmatprep.subr.bf16.mxu0 0
        %906 = vmatpush1.bf16.msra.mxu0 0
        %907 = vmatprep.subr.bf16.mxu0 0
        %908 = vmatpush1.bf16.msra.mxu0 0
        %909 = vmatprep.subr.bf16.mxu0 0
        %910 = vmatpush1.bf16.msra.mxu0 0
        %911 = vmatprep.subr.bf16.mxu0 0
        %912 = vmatpush1.bf16.msra.mxu0 0
        %913 = vmatprep.subr.bf16.mxu0 0
        %914 = vmatpush1.bf16.msra.mxu0 0
        %915 = vmatprep.subr.bf16.mxu0 0
        %916 = vmatpush1.bf16.msra.mxu0 0
        %917 = vmatprep.subr.bf16.mxu0 0
        %918 = vmatpush1.bf16.msra.mxu0 0
        %919 = vmatprep.mubr.bf16.mxu0 0
        %920 = vmatmul.mubr.bf16.gmra.mrb[0].mxu0 %v882
        %v921 = vpop.f32.mrb[0].mxu0
        %v922 = vadd.f32 0.0, %v921
        %v923 = vpop.f32.mrb[0].mxu0
        %v924 = vpop.f32.mrb[0].mxu0
        %v925 = vpop.f32.mrb[0].mxu0
        %926 = vdwg.mxu0
        %928 = vrot.lane.b32.xlu0 %v922, 16
        %v929 = vpop.permute.xlu0 %928
        %v931 = vsel %vm698, %v874, %v929
        %v932 = vpack.c.bf16 %v931, %v931
        %v933 = vld [vmem:[#allocation10] sm:$0xf]
        %v934 = vld [vmem:[#allocation10 + $0x4] sm:$0xf]
        %v935 = vld [vmem:[#allocation10 + $0x8] sm:$0xf]
        %v936 = vld [vmem:[#allocation10 + $0xc] sm:$0xf]
        %v937 = vld [vmem:[#allocation12] sm:$0x1]
        %v939 = vlaneseq
        %v940 = vshrl.u32 %v939, 7
        %v941 = vsub.s32 0, %v940
        %v942 = vrot.slane %v937, %v941
        %v948 = vunpack.c.l.b16 %v933
        %v949 = vunpack.c.l.b16 %v934
        %v950 = vunpack.c.l.b16 %v935
        %v951 = vunpack.c.l.b16 %v936
        %v952 = vpack.c.b16 %v949, %v948
        %v953 = vpack.c.b16 %v951, %v950
        %v957 = vsel %vm645, %v932, 0
        %959 = vmatprep.subr.bf16.mxu0 0
        %960 = vmatpush1.bf16.msra.mxu0 %v952
        %961 = vmatprep.subr.bf16.mxu0 0
        %962 = vmatpush1.bf16.msra.mxu0 %v953
        %963 = vmatprep.subr.bf16.mxu0 0
        %964 = vmatpush1.bf16.msra.mxu0 0
        %965 = vmatprep.subr.bf16.mxu0 0
        %966 = vmatpush1.bf16.msra.mxu0 0
        %967 = vmatprep.subr.bf16.mxu0 0
        %968 = vmatpush1.bf16.msra.mxu0 0
        %969 = vmatprep.subr.bf16.mxu0 0
        %970 = vmatpush1.bf16.msra.mxu0 0
        %971 = vmatprep.subr.bf16.mxu0 0
        %972 = vmatpush1.bf16.msra.mxu0 0
        %973 = vmatprep.subr.bf16.mxu0 0
        %974 = vmatpush1.bf16.msra.mxu0 0
        %975 = vmatprep.subr.bf16.mxu0 0
        %976 = vmatpush1.bf16.msra.mxu0 0
        %977 = vmatprep.subr.bf16.mxu0 0
        %978 = vmatpush1.bf16.msra.mxu0 0
        %979 = vmatprep.subr.bf16.mxu0 0
        %980 = vmatpush1.bf16.msra.mxu0 0
        %981 = vmatprep.subr.bf16.mxu0 0
        %982 = vmatpush1.bf16.msra.mxu0 0
        %983 = vmatprep.subr.bf16.mxu0 0
        %984 = vmatpush1.bf16.msra.mxu0 0
        %985 = vmatprep.subr.bf16.mxu0 0
        %986 = vmatpush1.bf16.msra.mxu0 0
        %987 = vmatprep.subr.bf16.mxu0 0
        %988 = vmatpush1.bf16.msra.mxu0 0
        %989 = vmatprep.subr.bf16.mxu0 0
        %990 = vmatpush1.bf16.msra.mxu0 0
        %991 = vmatprep.mubr.bf16.mxu0 0
        %992 = vmatmul.mubr.bf16.gmra.mrb[0].mxu0 %v957
        %v993 = vpop.f32.mrb[0].mxu0
        %v994 = vadd.f32 %v942, %v993
        %v995 = vpop.f32.mrb[0].mxu0
        %v996 = vpop.f32.mrb[0].mxu0
        %v997 = vpop.f32.mrb[0].mxu0
        %998 = vdwg.mxu0
        %v999 = vadd.f32 %v620, %v994
        %v1000 = vld [vmem:[#allocation13] sm:$0x1]
        %v1001 = vld [vmem:[#allocation15] sm:$0x1]
        %v1002 = vsel %vm645, %v999, 0.0
        %1003 = vadd.xlane.f32.xlu0 %v1002
        %v1004 = vpop.xlane.xlu0 %1003
        %v1005 = vrcp.pop 32.0
        %v1006 = vmul.f32 %v1004, %v1005
        %v1007 = vsub.f32 %v999, %v1006
        %v1008 = vmul.f32 %v1007, %v1007
        %v1009 = vsel %vm645, %v1008, 0.0
        %1010 = vadd.xlane.f32.xlu0 %v1009
        %v1011 = vpop.xlane.xlu0 %1010
        %v1012 = vmul.f32 %v1011, %v1005
        %v1013 = vadd.f32 %v1012, 1e-05
        %v1014 = vrsqrt.pop %v1013
        %v1015 = vmul.f32 %v1007, %v1014
        %v1017 = vlaneseq
        %v1018 = vshrl.u32 %v1017, 7
        %v1019 = vsub.s32 0, %v1018
        %v1020 = vrot.slane %v1000, %v1019
        %v1022 = vmul.f32 %v1015, %v1020
        %v1024 = vlaneseq
        %v1025 = vshrl.u32 %v1024, 7
        %v1026 = vsub.s32 0, %v1025
        %v1027 = vrot.slane %v1001, %v1026
        %v1029 = vadd.f32 %v1022, %v1027
        %v1030 = vpack.c.bf16 %v1029, %v1029
        %v1031 = vld [vmem:[#allocation16] sm:$0xf]
        %v1032 = vld [vmem:[#allocation16 + $0x4] sm:$0xf]
        %v1033 = vld [vmem:[#allocation16 + $0x8] sm:$0xf]
        %v1034 = vld [vmem:[#allocation16 + $0xc] sm:$0xf]
        %v1035 = vld [vmem:[#allocation18] sm:$0x1]
        %v1037 = vlaneseq
        %v1038 = vshrl.u32 %v1037, 7
        %v1039 = vsub.s32 0, %v1038
        %v1040 = vrot.slane %v1035, %v1039
        %v1046 = vunpack.c.l.b16 %v1031
        %v1047 = vunpack.c.l.b16 %v1032
        %v1048 = vunpack.c.l.b16 %v1033
        %v1049 = vunpack.c.l.b16 %v1034
        %v1050 = vpack.c.b16 %v1047, %v1046
        %v1051 = vpack.c.b16 %v1049, %v1048
        %v1055 = vsel %vm645, %v1030, 0
        %1057 = vmatprep.subr.bf16.mxu0 0
        %1058 = vmatpush1.bf16.msra.mxu0 %v1050
        %1059 = vmatprep.subr.bf16.mxu0 0
        %1060 = vmatpush1.bf16.msra.mxu0 %v1051
        %1061 = vmatprep.subr.bf16.mxu0 0
        %1062 = vmatpush1.bf16.msra.mxu0 0
        %1063 = vmatprep.subr.bf16.mxu0 0
        %1064 = vmatpush1.bf16.msra.mxu0 0
        %1065 = vmatprep.subr.bf16.mxu0 0
        %1066 = vmatpush1.bf16.msra.mxu0 0
        %1067 = vmatprep.subr.bf16.mxu0 0
        %1068 = vmatpush1.bf16.msra.mxu0 0
        %1069 = vmatprep.subr.bf16.mxu0 0
        %1070 = vmatpush1.bf16.msra.mxu0 0
        %1071 = vmatprep.subr.bf16.mxu0 0
        %1072 = vmatpush1.bf16.msra.mxu0 0
        %1073 = vmatprep.subr.bf16.mxu0 0
        %1074 = vmatpush1.bf16.msra.mxu0 0
        %1075 = vmatprep.subr.bf16.mxu0 0
        %1076 = vmatpush1.bf16.msra.mxu0 0
        %1077 = vmatprep.subr.bf16.mxu0 0
        %1078 = vmatpush1.bf16.msra.mxu0 0
        %1079 = vmatprep.subr.bf16.mxu0 0
        %1080 = vmatpush1.bf16.msra.mxu0 0
        %1081 = vmatprep.subr.bf16.mxu0 0
        %1082 = vmatpush1.bf16.msra.mxu0 0
        %1083 = vmatprep.subr.bf16.mxu0 0
        %1084 = vmatpush1.bf16.msra.mxu0 0
        %1085 = vmatprep.subr.bf16.mxu0 0
        %1086 = vmatpush1.bf16.msra.mxu0 0
        %1087 = vmatprep.subr.bf16.mxu0 0
        %1088 = vmatpush1.bf16.msra.mxu0 0
        %1089 = vmatprep.mubr.bf16.mxu0 0
        %1090 = vmatmul.mubr.bf16.gmra.mrb[0].mxu0 %v1055
        %v1091 = vpop.f32.mrb[0].mxu0
        %v1092 = vadd.f32 %v1040, %v1091
        %v1093 = vpop.f32.mrb[0].mxu0
        %v1094 = vpop.f32.mrb[0].mxu0
        %v1095 = vpop.f32.mrb[0].mxu0
        %1096 = vdwg.mxu0
        %v1097 = vmax.f32 %v1092, 0.0
        %v1098 = vpack.c.bf16 %v1097, %v1097
        %v1099 = vld [vmem:[#allocation19] sm:$0xf]
        %v1100 = vld [vmem:[#allocation19 + $0x4] sm:$0xf]
        %v1101 = vld [vmem:[#allocation19 + $0x8] sm:$0xf]
        %v1102 = vld [vmem:[#allocation19 + $0xc] sm:$0xf]
        %v1103 = vld [vmem:[#allocation19 + $0x10] sm:$0xf]
        %v1104 = vld [vmem:[#allocation19 + $0x14] sm:$0xf]
        %v1105 = vld [vmem:[#allocation19 + $0x18] sm:$0xf]
        %v1106 = vld [vmem:[#allocation19 + $0x1c] sm:$0xf]
        %v1107 = vld [vmem:[#allocation21] sm:$0x1]
        %v1109 = vlaneseq
        %v1110 = vshrl.u32 %v1109, 7
        %v1111 = vsub.s32 0, %v1110
        %v1112 = vrot.slane %v1107, %v1111
        %v1122 = vunpack.c.l.b16 %v1099
        %v1123 = vunpack.c.l.b16 %v1100
        %v1124 = vunpack.c.l.b16 %v1101
        %v1125 = vunpack.c.l.b16 %v1102
        %v1126 = vunpack.c.l.b16 %v1103
        %v1127 = vunpack.c.l.b16 %v1104
        %v1128 = vunpack.c.l.b16 %v1105
        %v1129 = vunpack.c.l.b16 %v1106
        %v1130 = vpack.c.b16 %v1123, %v1122
        %v1131 = vpack.c.b16 %v1125, %v1124
        %v1132 = vpack.c.b16 %v1127, %v1126
        %v1133 = vpack.c.b16 %v1129, %v1128
        %vm1138 = vcmask 523264
        %v1140 = vsel %vm1138, %v1098, 0
        %1142 = vmatprep.subr.bf16.mxu0 0
        %1143 = vmatpush1.bf16.msra.mxu0 %v1130
        %1144 = vmatprep.subr.bf16.mxu0 0
        %1145 = vmatpush1.bf16.msra.mxu0 %v1131
        %1146 = vmatprep.subr.bf16.mxu0 0
        %1147 = vmatpush1.bf16.msra.mxu0 %v1132
        %1148 = vmatprep.subr.bf16.mxu0 0
        %1149 = vmatpush1.bf16.msra.mxu0 %v1133
        %1150 = vmatprep.subr.bf16.mxu0 0
        %1151 = vmatpush1.bf16.msra.mxu0 0
        %1152 = vmatprep.subr.bf16.mxu0 0
        %1153 = vmatpush1.bf16.msra.mxu0 0
        %1154 = vmatprep.subr.bf16.mxu0 0
        %1155 = vmatpush1.bf16.msra.mxu0 0
        %1156 = vmatprep.subr.bf16.mxu0 0
        %1157 = vmatpush1.bf16.msra.mxu0 0
        %1158 = vmatprep.subr.bf16.mxu0 0
        %1159 = vmatpush1.bf16.msra.mxu0 0
        %1160 = vmatprep.subr.bf16.mxu0 0
        %1161 = vmatpush1.bf16.msra.mxu0 0
        %1162 = vmatprep.subr.bf16.mxu0 0
        %1163 = vmatpush1.bf16.msra.mxu0 0
        %1164 = vmatprep.subr.bf16.mxu0 0
        %1165 = vmatpush1.bf16.msra.mxu0 0
        %1166 = vmatprep.subr.bf16.mxu0 0
        %1167 = vmatpush1.bf16.msra.mxu0 0
        %1168 = vmatprep.subr.bf16.mxu0 0
        %1169 = vmatpush1.bf16.msra.mxu0 0
        %1170 = vmatprep.subr.bf16.mxu0 0
        %1171 = vmatpush1.bf16.msra.mxu0 0
        %1172 = vmatprep.subr.bf16.mxu0 0
        %1173 = vmatpush1.bf16.msra.mxu0 0
        %1174 = vmatprep.mubr.bf16.mxu0 0
        %1175 = vmatmul.mubr.bf16.gmra.mrb[0].mxu0 %v1140
        %v1176 = vpop.f32.mrb[0].mxu0
        %v1177 = vadd.f32 %v1112, %v1176
        %v1178 = vpop.f32.mrb[0].mxu0
        %v1179 = vpop.f32.mrb[0].mxu0
        %v1180 = vpop.f32.mrb[0].mxu0
        %1181 = vdwg.mxu0
        %v1182 = vadd.f32 %v1029, %v1177
        %v1183 = vld [vmem:[#allocation22] sm:$0x1]
        %v1184 = vld [vmem:[#allocation24] sm:$0x1]
        %v1185 = vsel %vm645, %v1182, 0.0
        %1186 = vadd.xlane.f32.xlu0 %v1185
        %v1187 = vpop.xlane.xlu0 %1186
        %v1188 = vmul.f32 %v1187, %v1005
        %v1189 = vsub.f32 %v1182, %v1188
        %v1190 = vmul.f32 %v1189, %v1189
        %v1191 = vsel %vm645, %v1190, 0.0
        %1192 = vadd.xlane.f32.xlu0 %v1191
        %v1193 = vpop.xlane.xlu0 %1192
        %v1194 = vmul.f32 %v1193, %v1005
        %v1195 = vadd.f32 %v1194, 1e-05
        %v1196 = vrsqrt.pop %v1195
        %v1197 = vmul.f32 %v1189, %v1196
        %v1199 = vlaneseq
        %v1200 = vshrl.u32 %v1199, 7
        %v1201 = vsub.s32 0, %v1200
        %v1202 = vrot.slane %v1183, %v1201
        %v1204 = vmul.f32 %v1197, %v1202
        %v1206 = vlaneseq
        %v1207 = vshrl.u32 %v1206, 7
        %v1208 = vsub.s32 0, %v1207
        %v1209 = vrot.slane %v1184, %v1208
        %v1211 = vadd.f32 %v1204, %v1209
        %1212 = vst.msk [vmem:[%s618] sm:$0xff] %vm645, %v1211
        %s1213 = sand.u32 %s327, 1
        %s1214 = scalar_lea.sflag [#allocation6], %s1213
        %s1215 = sand.u32 %s327, 1
        %s1216 = smul.addr %s1215, 8
        %s1217 = scalar_lea.vmem [#allocation25], %s1216
        // Predicated region
        $region125: #{tpu_custom_call.1} parent=71 // pred_check
          %p1218 = pneg %p337
        $region126: #{tpu_custom_call.1} parent=71 // pred_check_branch
          %1220 = sbr.rel (%p1218) target = $region128
        $region127: #{tpu_custom_call.1} parent=71 // pred_region
          %s1222 = ssub.s32 128, 128
          %1223 = vsyncadd %s1214, %s1222
          %s1224 = smul.addr %s41, 128
          %s1225 = scalar_lea.hbm %s14, %s1224
          %s1227 = sshll.u32 %s1217, 4
          %s1228 = int_to_ptr.vmem [resolvable:$true] %s1227
          %1230 = dma.vmem_to_hbm [thread:$0]  %s1228, 128, %s1225, %s1214
        $region128: #{tpu_custom_call.1} parent=71 // pred_fallthru
          _
      $region72: #{tpu_custom_call.1} parent=5 // pred_fallthru
        _
      %p1231 = scmp.le.s32.totalorder 2, %s36
      // Predicated region
      $region129: #{tpu_custom_call.1} parent=5 // pred_check
        %p1232 = pneg %p1231
      $region130: #{tpu_custom_call.1} parent=5 // pred_check_branch
        %1234 = sbr.rel (%p1232) target = $region132
      $region131: #{tpu_custom_call.1} parent=5 // pred_region
        %s1235 = ssub.s32 %s36, 2
        // Predicated region
        $region133: #{tpu_custom_call.1} parent=131 // pred_check
          %p1236 = pneg %p343
        $region134: #{tpu_custom_call.1} parent=131 // pred_check_branch
          %1238 = sbr.rel (%p1236) target = $region136
        $region135: #{tpu_custom_call.1} parent=131 // pred_region
          %s1239 = sand.u32 %s328, 1
          %s1240 = scalar_lea.sflag [#allocation6], %s1239
          %s1241 = sand.u32 %s328, 1
          %s1242 = smul.addr %s1241, 8
          %s1243 = scalar_lea.vmem [#allocation25], %s1242
          %1244 = dma.done %s1240, 128
        $region136: #{tpu_custom_call.1} parent=131 // pred_fallthru
          _
      $region132: #{tpu_custom_call.1} parent=5 // pred_fallthru
        _
    $region6: #{tpu_custom_call.1} parent=1 // loop_footer
      %s40 = sadd.s32 1, %s36
    $region7: #{tpu_custom_call.1} parent=1 // loop_footer_branch
      %35 = sbr.rel target = $region3
    $region8: #{tpu_custom_call.1} parent=1 // loop_exit
      _
    %1245 = vsyncpa [#allocation5], 1
    %s1246 = scalar_lea.sflag [#allocation5], 1
    %1247 = vsyncpa %s1246, 1
    %1248 = vsyncpa [#allocation8], 1
    %1249 = vsyncpa [#allocation11], 1
    %1250 = vsyncpa [#allocation14], 1
    %1251 = vsyncpa [#allocation17], 1
    %1252 = vsyncpa [#allocation20], 1
    %1253 = vsyncpa [#allocation23], 1
    %1254 = vsyncpa [#allocation6], 1
    %s1255 = scalar_lea.sflag [#allocation6], 1
    %1256 = vsyncpa %s1255, 1

</llo_original>
